<compile_context>
chip_gen: v5e
topology: v5e:2x2
jax: 0.10.0
libtpu: 0.0.40
codegen_flags: <defaults>
</compile_context>

<pallas_src>
import jax
import jax.numpy as jnp
from jax.experimental import pallas as pl
from jax.experimental.pallas import tpu as pltpu

HIDDEN = 32          # stand-in for BertConfig.hidden_size (small shape)
SEQ = 8
HEADS = 4
HEAD_DIM = HIDDEN // HEADS
INTERMEDIATE = 64
VOCAB = 100
LN_EPS = 1e-12       # BERT layernorm eps
COS_EPS = 1e-12      # guards against zero CLS embedding
OUT_LANES = 128      # lane-dense packed output width


def _layernorm(x, g, b):
    mu = jnp.mean(x, axis=-1, keepdims=True)
    var = jnp.mean((x - mu) ** 2, axis=-1, keepdims=True)
    return (x - mu) * jax.lax.rsqrt(var + LN_EPS) * g + b


# ----------------------------------------------------------------------------
# Single fused kernel: embedding LN -> encoder layer -> CLS -> pair split ->
#                      head linear + cosine, packed into one (P, 128) slab.
# Whole problem (B=4, S=8, H=32) is a few dozen KB -> no grid, no pipelining.
# TODO(synk): at real bert-base scale (H=768, 12 layers) add a grid over rows
# with dimension_semantics=("parallel",) (v7x 2nd TC) and bf16 weight
# pipelining (v7x 64 MiB VMEM) -- not needed at these toy shapes.
# ----------------------------------------------------------------------------
def sentence_bert_kernel(emb_ref, embg_ref, embb_ref,
                         wq_ref, bq_ref, wk_ref, bk_ref, wv_ref, bv_ref,
                         wo_ref, bo_ref, ln1g_ref, ln1b_ref,
                         w1_ref, b1_ref, w2_ref, b2_ref, ln2g_ref, ln2b_ref,
                         wl1_ref, wl2_ref, wl3_ref, blin_ref,
                         out_ref):
    B, S, H = emb_ref.shape
    T = B * S

    # Embedding layernorm (gather + adds done in the wrapper, LN fused here).
    x = _layernorm(emb_ref[...].reshape(T, H), embg_ref[...], embb_ref[...])

    # Q/K/V projections: single 2-D matmuls on the flattened token axis.
    q = jnp.dot(x, wq_ref[...], preferred_element_type=jnp.float32) + bq_ref[...]
    k = jnp.dot(x, wk_ref[...], preferred_element_type=jnp.float32) + bk_ref[...]
    v = jnp.dot(x, wv_ref[...], preferred_element_type=jnp.float32) + bv_ref[...]
    q3 = q.reshape(B, S, H)
    k3 = k.reshape(B, S, H)
    v3 = v.reshape(B, S, H)

    # Multi-head attention. TODO(synk): attention_mask assumed all-ones (no
    # padding), so BertSelfAttention's additive mask term is omitted.
    scale = HEAD_DIM ** -0.5
    ctx_heads = []
    for h in range(HEADS):                                   # static unroll
        lo = h * HEAD_DIM
        qh = q3[:, :, lo:lo + HEAD_DIM]
        kh = k3[:, :, lo:lo + HEAD_DIM]
        vh = v3[:, :, lo:lo + HEAD_DIM]
        scores = jnp.einsum('bqd,bkd->bqk', qh, kh,
                            preferred_element_type=jnp.float32) * scale
        probs = jax.nn.softmax(scores, axis=-1)
        ctx_heads.append(jnp.einsum('bqk,bkd->bqd', probs, vh,
                                    preferred_element_type=jnp.float32))
    ctx = jnp.concatenate(ctx_heads, axis=-1).reshape(T, H)

    # Single output projection (one K=H MXU pass) + bias once.
    attn = jnp.dot(ctx, wo_ref[...], preferred_element_type=jnp.float32) + bo_ref[...]
    h1 = _layernorm(x + attn, ln1g_ref[...], ln1b_ref[...])

    # FFN.  TODO(synk): HF bert uses exact erf GELU; tanh approx used here.
    ff = jnp.dot(h1, w1_ref[...], preferred_element_type=jnp.float32) + b1_ref[...]
    ff = jax.nn.gelu(ff, approximate=True)
    ff = jnp.dot(ff, w2_ref[...], preferred_element_type=jnp.float32) + b2_ref[...]
    hid = _layernorm(h1 + ff, ln2g_ref[...], ln2b_ref[...])          # (T, H)

    # CLS token, then interleaved pair split (s_emb[::2], s_emb[1::2]).
    cls = hid.reshape(B, S, H)[:, 0, :]                              # (B, H)
    pairs = cls.reshape(B // 2, 2, H)
    s1 = pairs[:, 0, :]                                              # (P, H)
    s2 = pairs[:, 1, :]                                              # (P, H)
    diff = jnp.abs(s1 - s2)

    # Decomposed head linear: concat-free (no lane shuffles).
    logits = (jnp.dot(s1, wl1_ref[...], preferred_element_type=jnp.float32)
              + jnp.dot(s2, wl2_ref[...], preferred_element_type=jnp.float32)
              + jnp.dot(diff, wl3_ref[...], preferred_element_type=jnp.float32)
              + blin_ref[...])                                       # (P, 2)

    # Cosine via rsqrt (EUP) -- no elementwise normalization divides.
    dot12 = jnp.sum(s1 * s2, axis=1, keepdims=True)
    inv1 = jax.lax.rsqrt(jnp.sum(s1 * s1, axis=1, keepdims=True) + COS_EPS)
    inv2 = jax.lax.rsqrt(jnp.sum(s2 * s2, axis=1, keepdims=True) + COS_EPS)
    cos = dot12 * inv1 * inv2                                        # (P, 1)

    # Lane-dense packed output: col 0,1 = logits, col 2 = cosine, rest zeros.
    P = B // 2
    col = jax.lax.broadcasted_iota(jnp.int32, (P, OUT_LANES), 1)
    slab = jnp.where(col == 0, logits[:, 0:1],
            jnp.where(col == 1, logits[:, 1:2],
             jnp.where(col == 2, cos, 0.0)))
    out_ref[...] = slab.astype(out_ref.dtype)


# ----------------------------------------------------------------------------
# Parameter init (deterministic, synthetic).
# ----------------------------------------------------------------------------
def init_params(key):
    ks = jax.random.split(key, 16)

    def nrm(k, shape, std=0.02):
        return (std * jax.random.normal(k, shape)).astype(jnp.float32)

    xavier_std = (2.0 / (3 * HIDDEN + 2)) ** 0.5            # xavier_normal_
    return dict(
        word_emb=nrm(ks[0], (VOCAB, HIDDEN)),
        pos_emb=nrm(ks[1], (SEQ, HIDDEN)),
        type_emb=nrm(ks[2], (2, HIDDEN)),
        emb_ln_g=jnp.ones((1, HIDDEN), jnp.float32),
        emb_ln_b=jnp.zeros((1, HIDDEN), jnp.float32),
        wq=nrm(ks[3], (HIDDEN, HIDDEN)),
        bq=jnp.zeros((1, HIDDEN), jnp.float32),
        wk=nrm(ks[4], (HIDDEN, HIDDEN)),
        bk=jnp.zeros((1, HIDDEN), jnp.float32),
        wv=nrm(ks[5], (HIDDEN, HIDDEN)),
        bv=jnp.zeros((1, HIDDEN), jnp.float32),
        wo=nrm(ks[6], (HIDDEN, HIDDEN)),
        bo=jnp.zeros((1, HIDDEN), jnp.float32),
        ln1_g=jnp.ones((1, HIDDEN), jnp.float32),
        ln1_b=jnp.zeros((1, HIDDEN), jnp.float32),
        w1=nrm(ks[7], (HIDDEN, INTERMEDIATE)),
        b1=jnp.zeros((1, INTERMEDIATE), jnp.float32),
        w2=nrm(ks[8], (INTERMEDIATE, HIDDEN)),
        b2=jnp.zeros((1, HIDDEN), jnp.float32),
        ln2_g=jnp.ones((1, HIDDEN), jnp.float32),
        ln2_b=jnp.zeros((1, HIDDEN), jnp.float32),
        # SentenceBert head: nn.Linear(hidden*3, 2), stored as (3H, 2) = W.T
        w_lin=nrm(ks[9], (3 * HIDDEN, 2), std=xavier_std),
        b_lin=jnp.zeros((1, 2), jnp.float32),
    )


# ----------------------------------------------------------------------------
# Forward wrapper. Only the token-id embedding gather (+ trivial adds) stays
# in XLA; everything else runs in the single fused Pallas kernel.
# ----------------------------------------------------------------------------
@jax.jit
def sentence_bert_forward(input_ids, params):
    B, S = input_ids.shape
    P = B // 2

    # TODO(synk): embedding-table gather left to XLA (data-dependent gather).
    emb = (params['word_emb'][input_ids]
           + params['pos_emb'][None, :, :]
           + params['type_emb'][0][None, None, :]).astype(jnp.float32)

    wl = params['w_lin']
    vmem = pl.BlockSpec(memory_space=pltpu.MemorySpace.VMEM)

    packed = pl.pallas_call(
        sentence_bert_kernel,
        out_shape=jax.ShapeDtypeStruct((P, OUT_LANES), jnp.float32),
        in_specs=[vmem] * 23,
        out_specs=vmem,
    )(emb,
      params['emb_ln_g'], params['emb_ln_b'],
      params['wq'], params['bq'], params['wk'], params['bk'],
      params['wv'], params['bv'], params['wo'], params['bo'],
      params['ln1_g'], params['ln1_b'],
      params['w1'], params['b1'], params['w2'], params['b2'],
      params['ln2_g'], params['ln2_b'],
      wl[0:HIDDEN], wl[HIDDEN:2 * HIDDEN], wl[2 * HIDDEN:3 * HIDDEN],
      params['b_lin'])

    output = packed[:, 0:2]                                  # (P, 2)
    cosine = packed[:, 2]                                    # (P,)
    return output, cosine


if __name__ == "__main__":
    key = jax.random.PRNGKey(0)
    pkey, dkey = jax.random.split(key)
    params = init_params(pkey)

    batch = 4  # 2 sentence pairs: rows {0,2} -> s1, rows {1,3} -> s2
    input_ids = jax.random.randint(dkey, (batch, SEQ), 0, VOCAB, dtype=jnp.int32)

    output, cosine_score = sentence_bert_forward(input_ids, params)
    jax.block_until_ready((output, cosine_score))

    assert output.shape == (batch // 2, 2)
    assert cosine_score.shape == (batch // 2,)
    assert bool(jnp.all(jnp.isfinite(output)))
    assert bool(jnp.all(jnp.abs(cosine_score) <= 1.0 + 1e-5))
    print("KERNEL_OK")
</pallas_src>

<mosaic_0001>
module attributes {stable_mosaic.version = 11 : i64} {
  func.func @sentence_bert_kernel(%arg0: memref<4x8x32xf32, #tpu.memory_space<vmem>>, %arg1: memref<1x32xf32, #tpu.memory_space<vmem>>, %arg2: memref<1x32xf32, #tpu.memory_space<vmem>>, %arg3: memref<32x32xf32, #tpu.memory_space<vmem>>, %arg4: memref<1x32xf32, #tpu.memory_space<vmem>>, %arg5: memref<32x32xf32, #tpu.memory_space<vmem>>, %arg6: memref<1x32xf32, #tpu.memory_space<vmem>>, %arg7: memref<32x32xf32, #tpu.memory_space<vmem>>, %arg8: memref<1x32xf32, #tpu.memory_space<vmem>>, %arg9: memref<32x32xf32, #tpu.memory_space<vmem>>, %arg10: memref<1x32xf32, #tpu.memory_space<vmem>>, %arg11: memref<1x32xf32, #tpu.memory_space<vmem>>, %arg12: memref<1x32xf32, #tpu.memory_space<vmem>>, %arg13: memref<32x64xf32, #tpu.memory_space<vmem>>, %arg14: memref<1x64xf32, #tpu.memory_space<vmem>>, %arg15: memref<64x32xf32, #tpu.memory_space<vmem>>, %arg16: memref<1x32xf32, #tpu.memory_space<vmem>>, %arg17: memref<1x32xf32, #tpu.memory_space<vmem>>, %arg18: memref<1x32xf32, #tpu.memory_space<vmem>>, %arg19: memref<32x2xf32, #tpu.memory_space<vmem>>, %arg20: memref<32x2xf32, #tpu.memory_space<vmem>>, %arg21: memref<32x2xf32, #tpu.memory_space<vmem>>, %arg22: memref<1x2xf32, #tpu.memory_space<vmem>>, %arg23: memref<2x128xf32, #tpu.memory_space<vmem>>) attributes {dimension_semantics = [], scalar_prefetch = 0 : i64, scratch_operands = 0 : i64, tpu.core_type = #tpu.core_type<tc>} {
    %c0 = arith.constant 0 : index
    %c0_0 = arith.constant 0 : index
    %c0_1 = arith.constant 0 : index
    %0 = vector.load %arg0[%c0, %c0_0, %c0_1] : memref<4x8x32xf32, #tpu.memory_space<vmem>>, vector<4x8x32xf32>
    %1 = vector.shape_cast %0 : vector<4x8x32xf32> to vector<32x32xf32>
    %c0_2 = arith.constant 0 : index
    %c0_3 = arith.constant 0 : index
    %2 = vector.load %arg1[%c0_2, %c0_3] : memref<1x32xf32, #tpu.memory_space<vmem>>, vector<1x32xf32>
    %c0_4 = arith.constant 0 : index
    %c0_5 = arith.constant 0 : index
    %3 = vector.load %arg2[%c0_4, %c0_5] : memref<1x32xf32, #tpu.memory_space<vmem>>, vector<1x32xf32>
    %cst = arith.constant dense<0.000000e+00> : vector<32xf32>
    %4 = vector.multi_reduction <add>, %1, %cst [1] : vector<32x32xf32> to vector<32xf32>
    %5 = vector.shape_cast %4 : vector<32xf32> to vector<32x1xf32>
    %cst_6 = arith.constant 3.200000e+01 : f32
    %6 = vector.broadcast %cst_6 : f32 to vector<32x1xf32>
    %7 = arith.divf %5, %6 : vector<32x1xf32>
    %8 = vector.broadcast %7 : vector<32x1xf32> to vector<32x32xf32>
    %9 = arith.subf %1, %8 : vector<32x32xf32>
    %10 = arith.mulf %9, %9 : vector<32x32xf32>
    %cst_7 = arith.constant dense<0.000000e+00> : vector<32xf32>
    %11 = vector.multi_reduction <add>, %10, %cst_7 [1] : vector<32x32xf32> to vector<32xf32>
    %12 = vector.shape_cast %11 : vector<32xf32> to vector<32x1xf32>
    %cst_8 = arith.constant 3.200000e+01 : f32
    %13 = vector.broadcast %cst_8 : f32 to vector<32x1xf32>
    %14 = arith.divf %12, %13 : vector<32x1xf32>
    %15 = vector.broadcast %7 : vector<32x1xf32> to vector<32x32xf32>
    %16 = arith.subf %1, %15 : vector<32x32xf32>
    %cst_9 = arith.constant 9.99999996E-13 : f32
    %17 = vector.broadcast %cst_9 : f32 to vector<32x1xf32>
    %18 = arith.addf %14, %17 : vector<32x1xf32>
    %19 = math.rsqrt %18 : vector<32x1xf32>
    %20 = vector.broadcast %19 : vector<32x1xf32> to vector<32x32xf32>
    %21 = arith.mulf %16, %20 : vector<32x32xf32>
    %22 = vector.broadcast %2 : vector<1x32xf32> to vector<32x32xf32>
    %23 = arith.mulf %21, %22 : vector<32x32xf32>
    %24 = vector.broadcast %3 : vector<1x32xf32> to vector<32x32xf32>
    %25 = arith.addf %23, %24 : vector<32x32xf32>
    %c0_10 = arith.constant 0 : index
    %c0_11 = arith.constant 0 : index
    %26 = vector.load %arg3[%c0_10, %c0_11] : memref<32x32xf32, #tpu.memory_space<vmem>>, vector<32x32xf32>
    %cst_12 = arith.constant dense<0.000000e+00> : vector<32x32xf32>
    %27 = tpu.matmul %25, %26, %cst_12 {dimension_numbers = #tpu.dot_dimension_numbers<[1], [0], [0], [1], [0, 0, 1, 1], [], []>} : vector<32x32xf32>, vector<32x32xf32>, vector<32x32xf32> -> vector<32x32xf32>
    %c0_13 = arith.constant 0 : index
    %c0_14 = arith.constant 0 : index
    %28 = vector.load %arg4[%c0_13, %c0_14] : memref<1x32xf32, #tpu.memory_space<vmem>>, vector<1x32xf32>
    %29 = vector.broadcast %28 : vector<1x32xf32> to vector<32x32xf32>
    %30 = arith.addf %27, %29 : vector<32x32xf32>
    %c0_15 = arith.constant 0 : index
    %c0_16 = arith.constant 0 : index
    %31 = vector.load %arg5[%c0_15, %c0_16] : memref<32x32xf32, #tpu.memory_space<vmem>>, vector<32x32xf32>
    %cst_17 = arith.constant dense<0.000000e+00> : vector<32x32xf32>
    %32 = tpu.matmul %25, %31, %cst_17 {dimension_numbers = #tpu.dot_dimension_numbers<[1], [0], [0], [1], [0, 0, 1, 1], [], []>} : vector<32x32xf32>, vector<32x32xf32>, vector<32x32xf32> -> vector<32x32xf32>
    %c0_18 = arith.constant 0 : index
    %c0_19 = arith.constant 0 : index
    %33 = vector.load %arg6[%c0_18, %c0_19] : memref<1x32xf32, #tpu.memory_space<vmem>>, vector<1x32xf32>
    %34 = vector.broadcast %33 : vector<1x32xf32> to vector<32x32xf32>
    %35 = arith.addf %32, %34 : vector<32x32xf32>
    %c0_20 = arith.constant 0 : index
    %c0_21 = arith.constant 0 : index
    %36 = vector.load %arg7[%c0_20, %c0_21] : memref<32x32xf32, #tpu.memory_space<vmem>>, vector<32x32xf32>
    %cst_22 = arith.constant dense<0.000000e+00> : vector<32x32xf32>
    %37 = tpu.matmul %25, %36, %cst_22 {dimension_numbers = #tpu.dot_dimension_numbers<[1], [0], [0], [1], [0, 0, 1, 1], [], []>} : vector<32x32xf32>, vector<32x32xf32>, vector<32x32xf32> -> vector<32x32xf32>
    %c0_23 = arith.constant 0 : index
    %c0_24 = arith.constant 0 : index
    %38 = vector.load %arg8[%c0_23, %c0_24] : memref<1x32xf32, #tpu.memory_space<vmem>>, vector<1x32xf32>
    %39 = vector.broadcast %38 : vector<1x32xf32> to vector<32x32xf32>
    %40 = arith.addf %37, %39 : vector<32x32xf32>
    %41 = vector.shape_cast %30 : vector<32x32xf32> to vector<4x8x32xf32>
    %42 = vector.shape_cast %35 : vector<32x32xf32> to vector<4x8x32xf32>
    %43 = vector.shape_cast %40 : vector<32x32xf32> to vector<4x8x32xf32>
    %44 = vector.extract_strided_slice %41 {offsets = [0, 0, 0], sizes = [4, 8, 8], strides = [1, 1, 1]} : vector<4x8x32xf32> to vector<4x8x8xf32>
    %45 = vector.extract_strided_slice %42 {offsets = [0, 0, 0], sizes = [4, 8, 8], strides = [1, 1, 1]} : vector<4x8x32xf32> to vector<4x8x8xf32>
    %46 = vector.extract_strided_slice %43 {offsets = [0, 0, 0], sizes = [4, 8, 8], strides = [1, 1, 1]} : vector<4x8x32xf32> to vector<4x8x8xf32>
    "tpu.trace_start"() <{level = 10 : i32, message = "bqd,bkd->bqk"}> : () -> ()
    %cst_25 = arith.constant dense<0.000000e+00> : vector<4x8x8xf32>
    %47 = tpu.matmul %44, %45, %cst_25 {dimension_numbers = #tpu.dot_dimension_numbers<[2], [2], [1], [1], [0, 0, 0, 1, 1, 1], [0], [0]>} : vector<4x8x8xf32>, vector<4x8x8xf32>, vector<4x8x8xf32> -> vector<4x8x8xf32>
    "tpu.trace_stop"() : () -> ()
    %cst_26 = arith.constant 0.353553385 : f32
    %48 = vector.broadcast %cst_26 : f32 to vector<4x8x8xf32>
    %49 = arith.mulf %47, %48 : vector<4x8x8xf32>
    %cst_27 = arith.constant dense<0xFF800000> : vector<4x8xf32>
    %50 = vector.multi_reduction <maximumf>, %49, %cst_27 [2] : vector<4x8x8xf32> to vector<4x8xf32>
    %cst_28 = arith.constant 0xFF800000 : f32
    %51 = vector.broadcast %cst_28 : f32 to vector<4x8xf32>
    %52 = arith.maximumf %51, %50 : vector<4x8xf32>
    %53 = vector.shape_cast %52 : vector<4x8xf32> to vector<4x8x1xf32>
    %54 = vector.broadcast %53 : vector<4x8x1xf32> to vector<4x8x8xf32>
    %55 = arith.subf %49, %54 : vector<4x8x8xf32>
    %56 = math.exp %55 : vector<4x8x8xf32>
    %cst_29 = arith.constant dense<0.000000e+00> : vector<4x8xf32>
    %57 = vector.multi_reduction <add>, %56, %cst_29 [2] : vector<4x8x8xf32> to vector<4x8xf32>
    %58 = vector.shape_cast %57 : vector<4x8xf32> to vector<4x8x1xf32>
    %59 = vector.broadcast %58 : vector<4x8x1xf32> to vector<4x8x8xf32>
    %60 = arith.divf %56, %59 : vector<4x8x8xf32>
    "tpu.trace_start"() <{level = 10 : i32, message = "bqk,bkd->bqd"}> : () -> ()
    %cst_30 = arith.constant dense<0.000000e+00> : vector<4x8x8xf32>
    %61 = tpu.matmul %60, %46, %cst_30 {dimension_numbers = #tpu.dot_dimension_numbers<[2], [1], [1], [2], [0, 0, 0, 1, 1, 2], [0], [0]>} : vector<4x8x8xf32>, vector<4x8x8xf32>, vector<4x8x8xf32> -> vector<4x8x8xf32>
    "tpu.trace_stop"() : () -> ()
    %62 = vector.extract_strided_slice %41 {offsets = [0, 0, 8], sizes = [4, 8, 8], strides = [1, 1, 1]} : vector<4x8x32xf32> to vector<4x8x8xf32>
    %63 = vector.extract_strided_slice %42 {offsets = [0, 0, 8], sizes = [4, 8, 8], strides = [1, 1, 1]} : vector<4x8x32xf32> to vector<4x8x8xf32>
    %64 = vector.extract_strided_slice %43 {offsets = [0, 0, 8], sizes = [4, 8, 8], strides = [1, 1, 1]} : vector<4x8x32xf32> to vector<4x8x8xf32>
    "tpu.trace_start"() <{level = 10 : i32, message = "bqd,bkd->bqk"}> : () -> ()
    %cst_31 = arith.constant dense<0.000000e+00> : vector<4x8x8xf32>
    %65 = tpu.matmul %62, %63, %cst_31 {dimension_numbers = #tpu.dot_dimension_numbers<[2], [2], [1], [1], [0, 0, 0, 1, 1, 1], [0], [0]>} : vector<4x8x8xf32>, vector<4x8x8xf32>, vector<4x8x8xf32> -> vector<4x8x8xf32>
    "tpu.trace_stop"() : () -> ()
    %cst_32 = arith.constant 0.353553385 : f32
    %66 = vector.broadcast %cst_32 : f32 to vector<4x8x8xf32>
    %67 = arith.mulf %65, %66 : vector<4x8x8xf32>
    %cst_33 = arith.constant dense<0xFF800000> : vector<4x8xf32>
    %68 = vector.multi_reduction <maximumf>, %67, %cst_33 [2] : vector<4x8x8xf32> to vector<4x8xf32>
    %cst_34 = arith.constant 0xFF800000 : f32
    %69 = vector.broadcast %cst_34 : f32 to vector<4x8xf32>
    %70 = arith.maximumf %69, %68 : vector<4x8xf32>
    %71 = vector.shape_cast %70 : vector<4x8xf32> to vector<4x8x1xf32>
    %72 = vector.broadcast %71 : vector<4x8x1xf32> to vector<4x8x8xf32>
    %73 = arith.subf %67, %72 : vector<4x8x8xf32>
    %74 = math.exp %73 : vector<4x8x8xf32>
    %cst_35 = arith.constant dense<0.000000e+00> : vector<4x8xf32>
    %75 = vector.multi_reduction <add>, %74, %cst_35 [2] : vector<4x8x8xf32> to vector<4x8xf32>
    %76 = vector.shape_cast %75 : vector<4x8xf32> to vector<4x8x1xf32>
    %77 = vector.broadcast %76 : vector<4x8x1xf32> to vector<4x8x8xf32>
    %78 = arith.divf %74, %77 : vector<4x8x8xf32>
    "tpu.trace_start"() <{level = 10 : i32, message = "bqk,bkd->bqd"}> : () -> ()
    %cst_36 = arith.constant dense<0.000000e+00> : vector<4x8x8xf32>
    %79 = tpu.matmul %78, %64, %cst_36 {dimension_numbers = #tpu.dot_dimension_numbers<[2], [1], [1], [2], [0, 0, 0, 1, 1, 2], [0], [0]>} : vector<4x8x8xf32>, vector<4x8x8xf32>, vector<4x8x8xf32> -> vector<4x8x8xf32>
    "tpu.trace_stop"() : () -> ()
    %80 = vector.extract_strided_slice %41 {offsets = [0, 0, 16], sizes = [4, 8, 8], strides = [1, 1, 1]} : vector<4x8x32xf32> to vector<4x8x8xf32>
    %81 = vector.extract_strided_slice %42 {offsets = [0, 0, 16], sizes = [4, 8, 8], strides = [1, 1, 1]} : vector<4x8x32xf32> to vector<4x8x8xf32>
    %82 = vector.extract_strided_slice %43 {offsets = [0, 0, 16], sizes = [4, 8, 8], strides = [1, 1, 1]} : vector<4x8x32xf32> to vector<4x8x8xf32>
    "tpu.trace_start"() <{level = 10 : i32, message = "bqd,bkd->bqk"}> : () -> ()
    %cst_37 = arith.constant dense<0.000000e+00> : vector<4x8x8xf32>
    %83 = tpu.matmul %80, %81, %cst_37 {dimension_numbers = #tpu.dot_dimension_numbers<[2], [2], [1], [1], [0, 0, 0, 1, 1, 1], [0], [0]>} : vector<4x8x8xf32>, vector<4x8x8xf32>, vector<4x8x8xf32> -> vector<4x8x8xf32>
    "tpu.trace_stop"() : () -> ()
    %cst_38 = arith.constant 0.353553385 : f32
    %84 = vector.broadcast %cst_38 : f32 to vector<4x8x8xf32>
    %85 = arith.mulf %83, %84 : vector<4x8x8xf32>
    %cst_39 = arith.constant dense<0xFF800000> : vector<4x8xf32>
    %86 = vector.multi_reduction <maximumf>, %85, %cst_39 [2] : vector<4x8x8xf32> to vector<4x8xf32>
    %cst_40 = arith.constant 0xFF800000 : f32
    %87 = vector.broadcast %cst_40 : f32 to vector<4x8xf32>
    %88 = arith.maximumf %87, %86 : vector<4x8xf32>
    %89 = vector.shape_cast %88 : vector<4x8xf32> to vector<4x8x1xf32>
    %90 = vector.broadcast %89 : vector<4x8x1xf32> to vector<4x8x8xf32>
    %91 = arith.subf %85, %90 : vector<4x8x8xf32>
    %92 = math.exp %91 : vector<4x8x8xf32>
    %cst_41 = arith.constant dense<0.000000e+00> : vector<4x8xf32>
    %93 = vector.multi_reduction <add>, %92, %cst_41 [2] : vector<4x8x8xf32> to vector<4x8xf32>
    %94 = vector.shape_cast %93 : vector<4x8xf32> to vector<4x8x1xf32>
    %95 = vector.broadcast %94 : vector<4x8x1xf32> to vector<4x8x8xf32>
    %96 = arith.divf %92, %95 : vector<4x8x8xf32>
    "tpu.trace_start"() <{level = 10 : i32, message = "bqk,bkd->bqd"}> : () -> ()
    %cst_42 = arith.constant dense<0.000000e+00> : vector<4x8x8xf32>
    %97 = tpu.matmul %96, %82, %cst_42 {dimension_numbers = #tpu.dot_dimension_numbers<[2], [1], [1], [2], [0, 0, 0, 1, 1, 2], [0], [0]>} : vector<4x8x8xf32>, vector<4x8x8xf32>, vector<4x8x8xf32> -> vector<4x8x8xf32>
    "tpu.trace_stop"() : () -> ()
    %98 = vector.extract_strided_slice %41 {offsets = [0, 0, 24], sizes = [4, 8, 8], strides = [1, 1, 1]} : vector<4x8x32xf32> to vector<4x8x8xf32>
    %99 = vector.extract_strided_slice %42 {offsets = [0, 0, 24], sizes = [4, 8, 8], strides = [1, 1, 1]} : vector<4x8x32xf32> to vector<4x8x8xf32>
    %100 = vector.extract_strided_slice %43 {offsets = [0, 0, 24], sizes = [4, 8, 8], strides = [1, 1, 1]} : vector<4x8x32xf32> to vector<4x8x8xf32>
    "tpu.trace_start"() <{level = 10 : i32, message = "bqd,bkd->bqk"}> : () -> ()
    %cst_43 = arith.constant dense<0.000000e+00> : vector<4x8x8xf32>
    %101 = tpu.matmul %98, %99, %cst_43 {dimension_numbers = #tpu.dot_dimension_numbers<[2], [2], [1], [1], [0, 0, 0, 1, 1, 1], [0], [0]>} : vector<4x8x8xf32>, vector<4x8x8xf32>, vector<4x8x8xf32> -> vector<4x8x8xf32>
    "tpu.trace_stop"() : () -> ()
    %cst_44 = arith.constant 0.353553385 : f32
    %102 = vector.broadcast %cst_44 : f32 to vector<4x8x8xf32>
    %103 = arith.mulf %101, %102 : vector<4x8x8xf32>
    %cst_45 = arith.constant dense<0xFF800000> : vector<4x8xf32>
    %104 = vector.multi_reduction <maximumf>, %103, %cst_45 [2] : vector<4x8x8xf32> to vector<4x8xf32>
    %cst_46 = arith.constant 0xFF800000 : f32
    %105 = vector.broadcast %cst_46 : f32 to vector<4x8xf32>
    %106 = arith.maximumf %105, %104 : vector<4x8xf32>
    %107 = vector.shape_cast %106 : vector<4x8xf32> to vector<4x8x1xf32>
    %108 = vector.broadcast %107 : vector<4x8x1xf32> to vector<4x8x8xf32>
    %109 = arith.subf %103, %108 : vector<4x8x8xf32>
    %110 = math.exp %109 : vector<4x8x8xf32>
    %cst_47 = arith.constant dense<0.000000e+00> : vector<4x8xf32>
    %111 = vector.multi_reduction <add>, %110, %cst_47 [2] : vector<4x8x8xf32> to vector<4x8xf32>
    %112 = vector.shape_cast %111 : vector<4x8xf32> to vector<4x8x1xf32>
    %113 = vector.broadcast %112 : vector<4x8x1xf32> to vector<4x8x8xf32>
    %114 = arith.divf %110, %113 : vector<4x8x8xf32>
    "tpu.trace_start"() <{level = 10 : i32, message = "bqk,bkd->bqd"}> : () -> ()
    %cst_48 = arith.constant dense<0.000000e+00> : vector<4x8x8xf32>
    %115 = tpu.matmul %114, %100, %cst_48 {dimension_numbers = #tpu.dot_dimension_numbers<[2], [1], [1], [2], [0, 0, 0, 1, 1, 2], [0], [0]>} : vector<4x8x8xf32>, vector<4x8x8xf32>, vector<4x8x8xf32> -> vector<4x8x8xf32>
    "tpu.trace_stop"() : () -> ()
    %116 = tpu.concatenate %61, %79, %97, %115 in 2 : vector<4x8x8xf32>, vector<4x8x8xf32>, vector<4x8x8xf32>, vector<4x8x8xf32> -> vector<4x8x32xf32>
    %117 = vector.shape_cast %116 : vector<4x8x32xf32> to vector<32x32xf32>
    %c0_49 = arith.constant 0 : index
    %c0_50 = arith.constant 0 : index
    %118 = vector.load %arg9[%c0_49, %c0_50] : memref<32x32xf32, #tpu.memory_space<vmem>>, vector<32x32xf32>
    %cst_51 = arith.constant dense<0.000000e+00> : vector<32x32xf32>
    %119 = tpu.matmul %117, %118, %cst_51 {dimension_numbers = #tpu.dot_dimension_numbers<[1], [0], [0], [1], [0, 0, 1, 1], [], []>} : vector<32x32xf32>, vector<32x32xf32>, vector<32x32xf32> -> vector<32x32xf32>
    %c0_52 = arith.constant 0 : index
    %c0_53 = arith.constant 0 : index
    %120 = vector.load %arg10[%c0_52, %c0_53] : memref<1x32xf32, #tpu.memory_space<vmem>>, vector<1x32xf32>
    %121 = vector.broadcast %120 : vector<1x32xf32> to vector<32x32xf32>
    %122 = arith.addf %119, %121 : vector<32x32xf32>
    %123 = arith.addf %25, %122 : vector<32x32xf32>
    %c0_54 = arith.constant 0 : index
    %c0_55 = arith.constant 0 : index
    %124 = vector.load %arg11[%c0_54, %c0_55] : memref<1x32xf32, #tpu.memory_space<vmem>>, vector<1x32xf32>
    %c0_56 = arith.constant 0 : index
    %c0_57 = arith.constant 0 : index
    %125 = vector.load %arg12[%c0_56, %c0_57] : memref<1x32xf32, #tpu.memory_space<vmem>>, vector<1x32xf32>
    %cst_58 = arith.constant dense<0.000000e+00> : vector<32xf32>
    %126 = vector.multi_reduction <add>, %123, %cst_58 [1] : vector<32x32xf32> to vector<32xf32>
    %127 = vector.shape_cast %126 : vector<32xf32> to vector<32x1xf32>
    %cst_59 = arith.constant 3.200000e+01 : f32
    %128 = vector.broadcast %cst_59 : f32 to vector<32x1xf32>
    %129 = arith.divf %127, %128 : vector<32x1xf32>
    %130 = vector.broadcast %129 : vector<32x1xf32> to vector<32x32xf32>
    %131 = arith.subf %123, %130 : vector<32x32xf32>
    %132 = arith.mulf %131, %131 : vector<32x32xf32>
    %cst_60 = arith.constant dense<0.000000e+00> : vector<32xf32>
    %133 = vector.multi_reduction <add>, %132, %cst_60 [1] : vector<32x32xf32> to vector<32xf32>
    %134 = vector.shape_cast %133 : vector<32xf32> to vector<32x1xf32>
    %cst_61 = arith.constant 3.200000e+01 : f32
    %135 = vector.broadcast %cst_61 : f32 to vector<32x1xf32>
    %136 = arith.divf %134, %135 : vector<32x1xf32>
    %137 = vector.broadcast %129 : vector<32x1xf32> to vector<32x32xf32>
    %138 = arith.subf %123, %137 : vector<32x32xf32>
    %cst_62 = arith.constant 9.99999996E-13 : f32
    %139 = vector.broadcast %cst_62 : f32 to vector<32x1xf32>
    %140 = arith.addf %136, %139 : vector<32x1xf32>
    %141 = math.rsqrt %140 : vector<32x1xf32>
    %142 = vector.broadcast %141 : vector<32x1xf32> to vector<32x32xf32>
    %143 = arith.mulf %138, %142 : vector<32x32xf32>
    %144 = vector.broadcast %124 : vector<1x32xf32> to vector<32x32xf32>
    %145 = arith.mulf %143, %144 : vector<32x32xf32>
    %146 = vector.broadcast %125 : vector<1x32xf32> to vector<32x32xf32>
    %147 = arith.addf %145, %146 : vector<32x32xf32>
    %c0_63 = arith.constant 0 : index
    %c0_64 = arith.constant 0 : index
    %148 = vector.load %arg13[%c0_63, %c0_64] : memref<32x64xf32, #tpu.memory_space<vmem>>, vector<32x64xf32>
    %cst_65 = arith.constant dense<0.000000e+00> : vector<32x64xf32>
    %149 = tpu.matmul %147, %148, %cst_65 {dimension_numbers = #tpu.dot_dimension_numbers<[1], [0], [0], [1], [0, 0, 1, 1], [], []>} : vector<32x32xf32>, vector<32x64xf32>, vector<32x64xf32> -> vector<32x64xf32>
    %c0_66 = arith.constant 0 : index
    %c0_67 = arith.constant 0 : index
    %150 = vector.load %arg14[%c0_66, %c0_67] : memref<1x64xf32, #tpu.memory_space<vmem>>, vector<1x64xf32>
    %151 = vector.broadcast %150 : vector<1x64xf32> to vector<32x64xf32>
    %152 = arith.addf %149, %151 : vector<32x64xf32>
    %153 = arith.mulf %152, %152 : vector<32x64xf32>
    %154 = arith.mulf %152, %153 : vector<32x64xf32>
    %cst_68 = arith.constant 4.471500e-02 : f32
    %155 = vector.broadcast %cst_68 : f32 to vector<32x64xf32>
    %156 = arith.mulf %155, %154 : vector<32x64xf32>
    %157 = arith.addf %152, %156 : vector<32x64xf32>
    %cst_69 = arith.constant 0.797884583 : f32
    %158 = vector.broadcast %cst_69 : f32 to vector<32x64xf32>
    %159 = arith.mulf %158, %157 : vector<32x64xf32>
    %160 = math.tanh %159 : vector<32x64xf32>
    %cst_70 = arith.constant 1.000000e+00 : f32
    %161 = vector.broadcast %cst_70 : f32 to vector<32x64xf32>
    %162 = arith.addf %161, %160 : vector<32x64xf32>
    %cst_71 = arith.constant 5.000000e-01 : f32
    %163 = vector.broadcast %cst_71 : f32 to vector<32x64xf32>
    %164 = arith.mulf %163, %162 : vector<32x64xf32>
    %165 = arith.mulf %152, %164 : vector<32x64xf32>
    %c0_72 = arith.constant 0 : index
    %c0_73 = arith.constant 0 : index
    %166 = vector.load %arg15[%c0_72, %c0_73] : memref<64x32xf32, #tpu.memory_space<vmem>>, vector<64x32xf32>
    %cst_74 = arith.constant dense<0.000000e+00> : vector<32x32xf32>
    %167 = tpu.matmul %165, %166, %cst_74 {dimension_numbers = #tpu.dot_dimension_numbers<[1], [0], [0], [1], [0, 0, 1, 1], [], []>} : vector<32x64xf32>, vector<64x32xf32>, vector<32x32xf32> -> vector<32x32xf32>
    %c0_75 = arith.constant 0 : index
    %c0_76 = arith.constant 0 : index
    %168 = vector.load %arg16[%c0_75, %c0_76] : memref<1x32xf32, #tpu.memory_space<vmem>>, vector<1x32xf32>
    %169 = vector.broadcast %168 : vector<1x32xf32> to vector<32x32xf32>
    %170 = arith.addf %167, %169 : vector<32x32xf32>
    %171 = arith.addf %147, %170 : vector<32x32xf32>
    %c0_77 = arith.constant 0 : index
    %c0_78 = arith.constant 0 : index
    %172 = vector.load %arg17[%c0_77, %c0_78] : memref<1x32xf32, #tpu.memory_space<vmem>>, vector<1x32xf32>
    %c0_79 = arith.constant 0 : index
    %c0_80 = arith.constant 0 : index
    %173 = vector.load %arg18[%c0_79, %c0_80] : memref<1x32xf32, #tpu.memory_space<vmem>>, vector<1x32xf32>
    %cst_81 = arith.constant dense<0.000000e+00> : vector<32xf32>
    %174 = vector.multi_reduction <add>, %171, %cst_81 [1] : vector<32x32xf32> to vector<32xf32>
    %175 = vector.shape_cast %174 : vector<32xf32> to vector<32x1xf32>
    %cst_82 = arith.constant 3.200000e+01 : f32
    %176 = vector.broadcast %cst_82 : f32 to vector<32x1xf32>
    %177 = arith.divf %175, %176 : vector<32x1xf32>
    %178 = vector.broadcast %177 : vector<32x1xf32> to vector<32x32xf32>
    %179 = arith.subf %171, %178 : vector<32x32xf32>
    %180 = arith.mulf %179, %179 : vector<32x32xf32>
    %cst_83 = arith.constant dense<0.000000e+00> : vector<32xf32>
    %181 = vector.multi_reduction <add>, %180, %cst_83 [1] : vector<32x32xf32> to vector<32xf32>
    %182 = vector.shape_cast %181 : vector<32xf32> to vector<32x1xf32>
    %cst_84 = arith.constant 3.200000e+01 : f32
    %183 = vector.broadcast %cst_84 : f32 to vector<32x1xf32>
    %184 = arith.divf %182, %183 : vector<32x1xf32>
    %185 = vector.broadcast %177 : vector<32x1xf32> to vector<32x32xf32>
    %186 = arith.subf %171, %185 : vector<32x32xf32>
    %cst_85 = arith.constant 9.99999996E-13 : f32
    %187 = vector.broadcast %cst_85 : f32 to vector<32x1xf32>
    %188 = arith.addf %184, %187 : vector<32x1xf32>
    %189 = math.rsqrt %188 : vector<32x1xf32>
    %190 = vector.broadcast %189 : vector<32x1xf32> to vector<32x32xf32>
    %191 = arith.mulf %186, %190 : vector<32x32xf32>
    %192 = vector.broadcast %172 : vector<1x32xf32> to vector<32x32xf32>
    %193 = arith.mulf %191, %192 : vector<32x32xf32>
    %194 = vector.broadcast %173 : vector<1x32xf32> to vector<32x32xf32>
    %195 = arith.addf %193, %194 : vector<32x32xf32>
    %196 = vector.shape_cast %195 : vector<32x32xf32> to vector<4x8x32xf32>
    %197 = vector.extract_strided_slice %196 {offsets = [0, 0, 0], sizes = [4, 1, 32], strides = [1, 1, 1]} : vector<4x8x32xf32> to vector<4x1x32xf32>
    %198 = vector.shape_cast %197 : vector<4x1x32xf32> to vector<4x32xf32>
    %199 = vector.shape_cast %198 : vector<4x32xf32> to vector<2x2x32xf32>
    %200 = vector.extract_strided_slice %199 {offsets = [0, 0, 0], sizes = [2, 1, 32], strides = [1, 1, 1]} : vector<2x2x32xf32> to vector<2x1x32xf32>
    %201 = vector.shape_cast %200 : vector<2x1x32xf32> to vector<2x32xf32>
    %202 = vector.extract_strided_slice %199 {offsets = [0, 1, 0], sizes = [2, 1, 32], strides = [1, 1, 1]} : vector<2x2x32xf32> to vector<2x1x32xf32>
    %203 = vector.shape_cast %202 : vector<2x1x32xf32> to vector<2x32xf32>
    %204 = arith.subf %201, %203 : vector<2x32xf32>
    %205 = math.absf %204 : vector<2x32xf32>
    %c0_86 = arith.constant 0 : index
    %c0_87 = arith.constant 0 : index
    %206 = vector.load %arg19[%c0_86, %c0_87] : memref<32x2xf32, #tpu.memory_space<vmem>>, vector<32x2xf32>
    %cst_88 = arith.constant dense<0.000000e+00> : vector<2x2xf32>
    %207 = tpu.matmul %201, %206, %cst_88 {dimension_numbers = #tpu.dot_dimension_numbers<[1], [0], [0], [1], [0, 0, 1, 1], [], []>} : vector<2x32xf32>, vector<32x2xf32>, vector<2x2xf32> -> vector<2x2xf32>
    %c0_89 = arith.constant 0 : index
    %c0_90 = arith.constant 0 : index
    %208 = vector.load %arg20[%c0_89, %c0_90] : memref<32x2xf32, #tpu.memory_space<vmem>>, vector<32x2xf32>
    %cst_91 = arith.constant dense<0.000000e+00> : vector<2x2xf32>
    %209 = tpu.matmul %203, %208, %cst_91 {dimension_numbers = #tpu.dot_dimension_numbers<[1], [0], [0], [1], [0, 0, 1, 1], [], []>} : vector<2x32xf32>, vector<32x2xf32>, vector<2x2xf32> -> vector<2x2xf32>
    %210 = arith.addf %207, %209 : vector<2x2xf32>
    %c0_92 = arith.constant 0 : index
    %c0_93 = arith.constant 0 : index
    %211 = vector.load %arg21[%c0_92, %c0_93] : memref<32x2xf32, #tpu.memory_space<vmem>>, vector<32x2xf32>
    %cst_94 = arith.constant dense<0.000000e+00> : vector<2x2xf32>
    %212 = tpu.matmul %205, %211, %cst_94 {dimension_numbers = #tpu.dot_dimension_numbers<[1], [0], [0], [1], [0, 0, 1, 1], [], []>} : vector<2x32xf32>, vector<32x2xf32>, vector<2x2xf32> -> vector<2x2xf32>
    %213 = arith.addf %210, %212 : vector<2x2xf32>
    %c0_95 = arith.constant 0 : index
    %c0_96 = arith.constant 0 : index
    %214 = vector.load %arg22[%c0_95, %c0_96] : memref<1x2xf32, #tpu.memory_space<vmem>>, vector<1x2xf32>
    %215 = vector.broadcast %214 : vector<1x2xf32> to vector<2x2xf32>
    %216 = arith.addf %213, %215 : vector<2x2xf32>
    %217 = arith.mulf %201, %203 : vector<2x32xf32>
    %cst_97 = arith.constant dense<0.000000e+00> : vector<2xf32>
    %218 = vector.multi_reduction <add>, %217, %cst_97 [1] : vector<2x32xf32> to vector<2xf32>
    %219 = vector.shape_cast %218 : vector<2xf32> to vector<2x1xf32>
    %220 = arith.mulf %201, %201 : vector<2x32xf32>
    %cst_98 = arith.constant dense<0.000000e+00> : vector<2xf32>
    %221 = vector.multi_reduction <add>, %220, %cst_98 [1] : vector<2x32xf32> to vector<2xf32>
    %222 = vector.shape_cast %221 : vector<2xf32> to vector<2x1xf32>
    %cst_99 = arith.constant 9.99999996E-13 : f32
    %223 = vector.broadcast %cst_99 : f32 to vector<2x1xf32>
    %224 = arith.addf %222, %223 : vector<2x1xf32>
    %225 = math.rsqrt %224 : vector<2x1xf32>
    %226 = arith.mulf %203, %203 : vector<2x32xf32>
    %cst_100 = arith.constant dense<0.000000e+00> : vector<2xf32>
    %227 = vector.multi_reduction <add>, %226, %cst_100 [1] : vector<2x32xf32> to vector<2xf32>
    %228 = vector.shape_cast %227 : vector<2xf32> to vector<2x1xf32>
    %cst_101 = arith.constant 9.99999996E-13 : f32
    %229 = vector.broadcast %cst_101 : f32 to vector<2x1xf32>
    %230 = arith.addf %228, %229 : vector<2x1xf32>
    %231 = math.rsqrt %230 : vector<2x1xf32>
    %232 = arith.mulf %219, %225 : vector<2x1xf32>
    %233 = arith.mulf %232, %231 : vector<2x1xf32>
    %234 = tpu.iota {dimensions = array<i32: 1>} : vector<2x128xi32>
    %c0_i32 = arith.constant 0 : i32
    %235 = vector.broadcast %c0_i32 : i32 to vector<2x128xi32>
    %236 = arith.cmpi eq, %234, %235 : vector<2x128xi32>
    %237 = vector.extract_strided_slice %216 {offsets = [0, 0], sizes = [2, 1], strides = [1, 1]} : vector<2x2xf32> to vector<2x1xf32>
    %c1_i32 = arith.constant 1 : i32
    %238 = vector.broadcast %c1_i32 : i32 to vector<2x128xi32>
    %239 = arith.cmpi eq, %234, %238 : vector<2x128xi32>
    %240 = vector.extract_strided_slice %216 {offsets = [0, 1], sizes = [2, 1], strides = [1, 1]} : vector<2x2xf32> to vector<2x1xf32>
    %c2_i32 = arith.constant 2 : i32
    %241 = vector.broadcast %c2_i32 : i32 to vector<2x128xi32>
    %242 = arith.cmpi eq, %234, %241 : vector<2x128xi32>
    %cst_102 = arith.constant 0.000000e+00 : f32
    %243 = vector.shape_cast %233 : vector<2x1xf32> to vector<2x1xf32>
    %244 = vector.broadcast %243 : vector<2x1xf32> to vector<2x128xf32>
    %245 = vector.broadcast %cst_102 : f32 to vector<2x128xf32>
    %246 = arith.select %242, %244, %245 : vector<2x128xi1>, vector<2x128xf32>
    %247 = vector.shape_cast %240 : vector<2x1xf32> to vector<2x1xf32>
    %248 = vector.broadcast %247 : vector<2x1xf32> to vector<2x128xf32>
    %249 = arith.select %239, %248, %246 : vector<2x128xi1>, vector<2x128xf32>
    %250 = vector.shape_cast %237 : vector<2x1xf32> to vector<2x1xf32>
    %251 = vector.broadcast %250 : vector<2x1xf32> to vector<2x128xf32>
    %252 = arith.select %236, %251, %249 : vector<2x128xi1>, vector<2x128xf32>
    %c0_103 = arith.constant 0 : index
    %c0_104 = arith.constant 0 : index
    %253 = vector.load %arg23[%c0_103, %c0_104] : memref<2x128xf32, #tpu.memory_space<vmem>>, vector<2x128xf32>
    tpu.vector_store %arg23[%c0_103, %c0_104], %252 {strides = array<i32>} : memref<2x128xf32, #tpu.memory_space<vmem>>, vector<2x128xf32>,
    return
  }
}

</mosaic_0001>

<llo_original>
// kernel: sentence_bert_forward.1
$region0: #{sentence_bert_forward.1}
  #allocation0 [shape = 'u32[]', space=smem, size = 0x4, offset = 0x4, fixed_abs, tag = 'smem constant byte address 0x4 - core index']
  #allocation1 [shape = 'u32[72,128]{1,0:T(1,128)}', space=vmem, size = 0x9000, scoped, tag = 'internal scratch']
  %s0 = inlined_call_operand.vmem [shape: f32[4,8,32], index: 0, kind: input, shape index: {}]
  %s1 = inlined_call_operand.vmem [shape: f32[1,32], index: 1, kind: input, shape index: {}]
  %s2 = inlined_call_operand.vmem [shape: f32[1,32], index: 2, kind: input, shape index: {}]
  %s3 = inlined_call_operand.vmem [shape: f32[32,32], index: 3, kind: input, shape index: {}]
  %s4 = inlined_call_operand.vmem [shape: f32[1,32], index: 4, kind: input, shape index: {}]
  %s5 = inlined_call_operand.vmem [shape: f32[32,32], index: 5, kind: input, shape index: {}]
  %s6 = inlined_call_operand.vmem [shape: f32[1,32], index: 6, kind: input, shape index: {}]
  %s7 = inlined_call_operand.vmem [shape: f32[32,32], index: 7, kind: input, shape index: {}]
  %s8 = inlined_call_operand.vmem [shape: f32[1,32], index: 8, kind: input, shape index: {}]
  %s9 = inlined_call_operand.vmem [shape: f32[32,32], index: 9, kind: input, shape index: {}]
  %s10 = inlined_call_operand.vmem [shape: f32[1,32], index: 10, kind: input, shape index: {}]
  %s11 = inlined_call_operand.vmem [shape: f32[1,32], index: 11, kind: input, shape index: {}]
  %s12 = inlined_call_operand.vmem [shape: f32[1,32], index: 12, kind: input, shape index: {}]
  %s13 = inlined_call_operand.vmem [shape: f32[32,64], index: 13, kind: input, shape index: {}]
  %s14 = inlined_call_operand.vmem [shape: f32[1,64], index: 14, kind: input, shape index: {}]
  %s15 = inlined_call_operand.vmem [shape: f32[64,32], index: 15, kind: input, shape index: {}]
  %s16 = inlined_call_operand.vmem [shape: f32[1,32], index: 16, kind: input, shape index: {}]
  %s17 = inlined_call_operand.vmem [shape: f32[1,32], index: 17, kind: input, shape index: {}]
  %s18 = inlined_call_operand.vmem [shape: f32[1,32], index: 18, kind: input, shape index: {}]
  %s19 = inlined_call_operand.vmem [shape: f32[32,2], index: 19, kind: input, shape index: {}]
  %s20 = inlined_call_operand.vmem [shape: f32[32,2], index: 20, kind: input, shape index: {}]
  %s21 = inlined_call_operand.vmem [shape: f32[32,2], index: 21, kind: input, shape index: {}]
  %s22 = inlined_call_operand.vmem [shape: f32[1,2], index: 22, kind: input, shape index: {}]
  %s23 = inlined_call_operand.vmem [shape: f32[2,128], index: 23, kind: output, shape index: {}]
  %s24 = sld [smem:[#allocation0]]
  $region102: #{sentence_bert_forward.1} parent=0
    _
  %s26 = ssub.s32 1, %s24
  %s27 = scalar_select 0, %s26, %s24
  // Predicated region
  $region2: #{sentence_bert_forward.1} parent=0 // pred_check
    _
  $region3: #{sentence_bert_forward.1} parent=0 // pred_check_branch
    %29 = sbr.rel (0) target = $region5
  $region4: #{sentence_bert_forward.1} parent=0 // pred_region
    _
  $region5: #{sentence_bert_forward.1} parent=0 // pred_fallthru
    _
  // Predicated region
  $region6: #{sentence_bert_forward.1} parent=0 // pred_check
    _
  $region7: #{sentence_bert_forward.1} parent=0 // pred_check_branch
    %31 = sbr.rel (0) target = $region9
  $region8: #{sentence_bert_forward.1} parent=0 // pred_region
    _
  $region9: #{sentence_bert_forward.1} parent=0 // pred_fallthru
    _
  // Predicated region
  $region10: #{sentence_bert_forward.1} parent=0 // pred_check
    _
  $region11: #{sentence_bert_forward.1} parent=0 // pred_check_branch
    %33 = sbr.rel (0) target = $region13
  $region12: #{sentence_bert_forward.1} parent=0 // pred_region
    _
  $region13: #{sentence_bert_forward.1} parent=0 // pred_fallthru
    _
  // Predicated region
  $region14: #{sentence_bert_forward.1} parent=0 // pred_check
    _
  $region15: #{sentence_bert_forward.1} parent=0 // pred_check_branch
    %35 = sbr.rel (0) target = $region17
  $region16: #{sentence_bert_forward.1} parent=0 // pred_region
    _
  $region17: #{sentence_bert_forward.1} parent=0 // pred_fallthru
    _
  // Predicated region
  $region18: #{sentence_bert_forward.1} parent=0 // pred_check
    _
  $region19: #{sentence_bert_forward.1} parent=0 // pred_check_branch
    %37 = sbr.rel (0) target = $region21
  $region20: #{sentence_bert_forward.1} parent=0 // pred_region
    _
  $region21: #{sentence_bert_forward.1} parent=0 // pred_fallthru
    _
  // Predicated region
  $region22: #{sentence_bert_forward.1} parent=0 // pred_check
    _
  $region23: #{sentence_bert_forward.1} parent=0 // pred_check_branch
    %39 = sbr.rel (0) target = $region25
  $region24: #{sentence_bert_forward.1} parent=0 // pred_region
    _
  $region25: #{sentence_bert_forward.1} parent=0 // pred_fallthru
    _
  // Predicated region
  $region26: #{sentence_bert_forward.1} parent=0 // pred_check
    _
  $region27: #{sentence_bert_forward.1} parent=0 // pred_check_branch
    %41 = sbr.rel (0) target = $region29
  $region28: #{sentence_bert_forward.1} parent=0 // pred_region
    _
  $region29: #{sentence_bert_forward.1} parent=0 // pred_fallthru
    _
  // Predicated region
  $region30: #{sentence_bert_forward.1} parent=0 // pred_check
    _
  $region31: #{sentence_bert_forward.1} parent=0 // pred_check_branch
    %43 = sbr.rel (0) target = $region33
  $region32: #{sentence_bert_forward.1} parent=0 // pred_region
    _
  $region33: #{sentence_bert_forward.1} parent=0 // pred_fallthru
    _
  // Predicated region
  $region34: #{sentence_bert_forward.1} parent=0 // pred_check
    _
  $region35: #{sentence_bert_forward.1} parent=0 // pred_check_branch
    %45 = sbr.rel (0) target = $region37
  $region36: #{sentence_bert_forward.1} parent=0 // pred_region
    _
  $region37: #{sentence_bert_forward.1} parent=0 // pred_fallthru
    _
  // Predicated region
  $region38: #{sentence_bert_forward.1} parent=0 // pred_check
    _
  $region39: #{sentence_bert_forward.1} parent=0 // pred_check_branch
    %47 = sbr.rel (0) target = $region41
  $region40: #{sentence_bert_forward.1} parent=0 // pred_region
    _
  $region41: #{sentence_bert_forward.1} parent=0 // pred_fallthru
    _
  // Predicated region
  $region42: #{sentence_bert_forward.1} parent=0 // pred_check
    _
  $region43: #{sentence_bert_forward.1} parent=0 // pred_check_branch
    %49 = sbr.rel (0) target = $region45
  $region44: #{sentence_bert_forward.1} parent=0 // pred_region
    _
  $region45: #{sentence_bert_forward.1} parent=0 // pred_fallthru
    _
  // Predicated region
  $region46: #{sentence_bert_forward.1} parent=0 // pred_check
    _
  $region47: #{sentence_bert_forward.1} parent=0 // pred_check_branch
    %51 = sbr.rel (0) target = $region49
  $region48: #{sentence_bert_forward.1} parent=0 // pred_region
    _
  $region49: #{sentence_bert_forward.1} parent=0 // pred_fallthru
    _
  // Predicated region
  $region50: #{sentence_bert_forward.1} parent=0 // pred_check
    _
  $region51: #{sentence_bert_forward.1} parent=0 // pred_check_branch
    %53 = sbr.rel (0) target = $region53
  $region52: #{sentence_bert_forward.1} parent=0 // pred_region
    _
  $region53: #{sentence_bert_forward.1} parent=0 // pred_fallthru
    _
  // Predicated region
  $region54: #{sentence_bert_forward.1} parent=0 // pred_check
    _
  $region55: #{sentence_bert_forward.1} parent=0 // pred_check_branch
    %55 = sbr.rel (0) target = $region57
  $region56: #{sentence_bert_forward.1} parent=0 // pred_region
    _
  $region57: #{sentence_bert_forward.1} parent=0 // pred_fallthru
    _
  // Predicated region
  $region58: #{sentence_bert_forward.1} parent=0 // pred_check
    _
  $region59: #{sentence_bert_forward.1} parent=0 // pred_check_branch
    %57 = sbr.rel (0) target = $region61
  $region60: #{sentence_bert_forward.1} parent=0 // pred_region
    _
  $region61: #{sentence_bert_forward.1} parent=0 // pred_fallthru
    _
  // Predicated region
  $region62: #{sentence_bert_forward.1} parent=0 // pred_check
    _
  $region63: #{sentence_bert_forward.1} parent=0 // pred_check_branch
    %59 = sbr.rel (0) target = $region65
  $region64: #{sentence_bert_forward.1} parent=0 // pred_region
    _
  $region65: #{sentence_bert_forward.1} parent=0 // pred_fallthru
    _
  // Predicated region
  $region66: #{sentence_bert_forward.1} parent=0 // pred_check
    _
  $region67: #{sentence_bert_forward.1} parent=0 // pred_check_branch
    %61 = sbr.rel (0) target = $region69
  $region68: #{sentence_bert_forward.1} parent=0 // pred_region
    _
  $region69: #{sentence_bert_forward.1} parent=0 // pred_fallthru
    _
  // Predicated region
  $region70: #{sentence_bert_forward.1} parent=0 // pred_check
    _
  $region71: #{sentence_bert_forward.1} parent=0 // pred_check_branch
    %63 = sbr.rel (0) target = $region73
  $region72: #{sentence_bert_forward.1} parent=0 // pred_region
    _
  $region73: #{sentence_bert_forward.1} parent=0 // pred_fallthru
    _
  // Predicated region
  $region74: #{sentence_bert_forward.1} parent=0 // pred_check
    _
  $region75: #{sentence_bert_forward.1} parent=0 // pred_check_branch
    %65 = sbr.rel (0) target = $region77
  $region76: #{sentence_bert_forward.1} parent=0 // pred_region
    _
  $region77: #{sentence_bert_forward.1} parent=0 // pred_fallthru
    _
  // Predicated region
  $region78: #{sentence_bert_forward.1} parent=0 // pred_check
    _
  $region79: #{sentence_bert_forward.1} parent=0 // pred_check_branch
    %67 = sbr.rel (0) target = $region81
  $region80: #{sentence_bert_forward.1} parent=0 // pred_region
    _
  $region81: #{sentence_bert_forward.1} parent=0 // pred_fallthru
    _
  // Predicated region
  $region82: #{sentence_bert_forward.1} parent=0 // pred_check
    _
  $region83: #{sentence_bert_forward.1} parent=0 // pred_check_branch
    %69 = sbr.rel (0) target = $region85
  $region84: #{sentence_bert_forward.1} parent=0 // pred_region
    _
  $region85: #{sentence_bert_forward.1} parent=0 // pred_fallthru
    _
  // Predicated region
  $region86: #{sentence_bert_forward.1} parent=0 // pred_check
    _
  $region87: #{sentence_bert_forward.1} parent=0 // pred_check_branch
    %71 = sbr.rel (0) target = $region89
  $region88: #{sentence_bert_forward.1} parent=0 // pred_region
    _
  $region89: #{sentence_bert_forward.1} parent=0 // pred_fallthru
    _
  // Predicated region
  $region90: #{sentence_bert_forward.1} parent=0 // pred_check
    _
  $region91: #{sentence_bert_forward.1} parent=0 // pred_check_branch
    %73 = sbr.rel (0) target = $region93
  $region92: #{sentence_bert_forward.1} parent=0 // pred_region
    _
  $region93: #{sentence_bert_forward.1} parent=0 // pred_fallthru
    _
  %v74 = vld [vmem:[%s0] sm:$0xff]
  %v75 = vld [vmem:[%s0 + $0x8] sm:$0xff]
  %v76 = vld [vmem:[%s0 + $0x10] sm:$0xff]
  %v77 = vld [vmem:[%s0 + $0x18] sm:$0xff]
  %v78 = vld [vmem:[%s1] sm:$0x1]
  %v79 = vld [vmem:[%s2] sm:$0x1]
  %vm80 = vcmask 261120
  %v81 = vsel %vm80, %v74, 0.0
  %82 = vadd.xlane.f32.xlu0 %v81
  %v83 = vpop.xlane.xlu0 %82
  %v84 = vsel %vm80, %v75, 0.0
  %85 = vadd.xlane.f32.xlu0 %v84
  %v86 = vpop.xlane.xlu0 %85
  %v87 = vsel %vm80, %v76, 0.0
  %88 = vadd.xlane.f32.xlu0 %v87
  %v89 = vpop.xlane.xlu0 %88
  %v90 = vsel %vm80, %v77, 0.0
  %91 = vadd.xlane.f32.xlu0 %v90
  %v92 = vpop.xlane.xlu0 %91
  %v93 = vrcp.pop 32.0
  %v94 = vmul.f32 32.0, %v93
  %v95 = vsub.f32 1.0, %v94
  %v96 = vmul.f32 %v93, %v95
  %v97 = vadd.f32 %v93, %v96
  %vm98 = vweird.f32 %v93
  %v99 = vsel %vm98, %v93, %v97
  %v100 = vmul.f32 %v83, %v99
  %v101 = vmul.f32 %v86, %v99
  %v102 = vmul.f32 %v89, %v99
  %v103 = vmul.f32 %v92, %v99
  %v104 = vsub.f32 %v74, %v100
  %v105 = vsub.f32 %v75, %v101
  %v106 = vsub.f32 %v76, %v102
  %v107 = vsub.f32 %v77, %v103
  %v108 = vmul.f32 %v104, %v104
  %v109 = vmul.f32 %v105, %v105
  %v110 = vmul.f32 %v106, %v106
  %v111 = vmul.f32 %v107, %v107
  %v112 = vsel %vm80, %v108, 0.0
  %113 = vadd.xlane.f32.xlu0 %v112
  %v114 = vpop.xlane.xlu0 %113
  %v115 = vsel %vm80, %v109, 0.0
  %116 = vadd.xlane.f32.xlu0 %v115
  %v117 = vpop.xlane.xlu0 %116
  %v118 = vsel %vm80, %v110, 0.0
  %119 = vadd.xlane.f32.xlu0 %v118
  %v120 = vpop.xlane.xlu0 %119
  %v121 = vsel %vm80, %v111, 0.0
  %122 = vadd.xlane.f32.xlu0 %v121
  %v123 = vpop.xlane.xlu0 %122
  %v124 = vmul.f32 %v114, %v99
  %v125 = vmul.f32 %v117, %v99
  %v126 = vmul.f32 %v120, %v99
  %v127 = vmul.f32 %v123, %v99
  %v128 = vadd.f32 %v124, 1e-12
  %v129 = vadd.f32 %v125, 1e-12
  %v130 = vadd.f32 %v126, 1e-12
  %v131 = vadd.f32 %v127, 1e-12
  %v132 = vrsqrt.pop %v128
  %v133 = vmul.f32 %v132, %v128
  %v134 = vmul.f32 %v133, %v132
  %v135 = vmul.f32 0.5, %v134
  %v136 = vsub.f32 1.5, %v135
  %v137 = vmul.f32 %v132, %v136
  %vm138 = vweird.f32 %v128
  %vm139 = vweird.f32 %v132
  %vm140 = vmor %vm138, %vm139
  %v141 = vsel %vm140, %v132, %v137
  %v142 = vrsqrt.pop %v129
  %v143 = vmul.f32 %v142, %v129
  %v144 = vmul.f32 %v143, %v142
  %v145 = vmul.f32 0.5, %v144
  %v146 = vsub.f32 1.5, %v145
  %v147 = vmul.f32 %v142, %v146
  %vm148 = vweird.f32 %v129
  %vm149 = vweird.f32 %v142
  %vm150 = vmor %vm148, %vm149
  %v151 = vsel %vm150, %v142, %v147
  %v152 = vrsqrt.pop %v130
  %v153 = vmul.f32 %v152, %v130
  %v154 = vmul.f32 %v153, %v152
  %v155 = vmul.f32 0.5, %v154
  %v156 = vsub.f32 1.5, %v155
  %v157 = vmul.f32 %v152, %v156
  %vm158 = vweird.f32 %v130
  %vm159 = vweird.f32 %v152
  %vm160 = vmor %vm158, %vm159
  %v161 = vsel %vm160, %v152, %v157
  %v162 = vrsqrt.pop %v131
  %v163 = vmul.f32 %v162, %v131
  %v164 = vmul.f32 %v163, %v162
  %v165 = vmul.f32 0.5, %v164
  %v166 = vsub.f32 1.5, %v165
  %v167 = vmul.f32 %v162, %v166
  %vm168 = vweird.f32 %v131
  %vm169 = vweird.f32 %v162
  %vm170 = vmor %vm168, %vm169
  %v171 = vsel %vm170, %v162, %v167
  %v172 = vmul.f32 %v104, %v141
  %v173 = vmul.f32 %v105, %v151
  %v174 = vmul.f32 %v106, %v161
  %v175 = vmul.f32 %v107, %v171
  %v177 = vperm.slane %v78, 0
  %v179 = vmul.f32 %v172, %v177
  %v180 = vmul.f32 %v173, %v177
  %v181 = vmul.f32 %v174, %v177
  %v182 = vmul.f32 %v175, %v177
  %v184 = vperm.slane %v79, 0
  %v186 = vadd.f32 %v179, %v184
  %v187 = vadd.f32 %v180, %v184
  %v188 = vadd.f32 %v181, %v184
  %v189 = vadd.f32 %v182, %v184
  %v190 = vld [vmem:[%s3] sm:$0xff]
  %v191 = vld [vmem:[%s3 + $0x8] sm:$0xff]
  %v192 = vld [vmem:[%s3 + $0x10] sm:$0xff]
  %v193 = vld [vmem:[%s3 + $0x18] sm:$0xff]
  %v194 = vld [vmem:[%s4] sm:$0x1]
  %v196 = vperm.slane %v194, 0
  %v199 = vsel %vm80, %v186, 0
  %v202 = vsel %vm80, %v187, 0
  %v205 = vsel %vm80, %v188, 0
  %v208 = vsel %vm80, %v189, 0
  %210 = vmatpush.msra.mxu0 0.0
  %211 = vmatpush.msra.mxu0 0.0
  %212 = vmatpush.msra.mxu0 0.0
  %213 = vmatpush.msra.mxu0 0.0
  %214 = vmatpush.msra.mxu0 0.0
  %215 = vmatpush.msra.mxu0 0.0
  %216 = vmatpush.msra.mxu0 0.0
  %217 = vmatpush.msra.mxu0 0.0
  %218 = vmatpush.msra.mxu0 0.0
  %219 = vmatpush.msra.mxu0 0.0
  %220 = vmatpush.msra.mxu0 0.0
  %221 = vmatpush.msra.mxu0 0.0
  %222 = vmatpush.msra.mxu0 %v193
  %223 = vmatpush.msra.mxu0 %v192
  %224 = vmatpush.msra.mxu0 %v191
  %225 = vmatpush.msra.mxu0 %v190
  %226 = vmatmul.f32.gmra.mxu0 %v199
  %v227 = vpop.f32.mrf.mxu0
  %v228 = vadd.f32 %v196, %v227
  %229 = vmatmul.f32.gmra.mxu0 %v202
  %v230 = vpop.f32.mrf.mxu0
  %v231 = vadd.f32 %v196, %v230
  %232 = vmatmul.f32.gmra.mxu0 %v205
  %v233 = vpop.f32.mrf.mxu0
  %v234 = vadd.f32 %v196, %v233
  %235 = vmatmul.f32.gmra.mxu0 %v208
  %v236 = vpop.f32.mrf.mxu0
  %v237 = vadd.f32 %v196, %v236
  %238 = vdwg.mxu0
  %v239 = vld [vmem:[%s5] sm:$0xff]
  %v240 = vld [vmem:[%s5 + $0x8] sm:$0xff]
  %v241 = vld [vmem:[%s5 + $0x10] sm:$0xff]
  %v242 = vld [vmem:[%s5 + $0x18] sm:$0xff]
  %v243 = vld [vmem:[%s6] sm:$0x1]
  %v245 = vperm.slane %v243, 0
  %247 = vmatpush.msra.mxu0 0.0
  %248 = vmatpush.msra.mxu0 0.0
  %249 = vmatpush.msra.mxu0 0.0
  %250 = vmatpush.msra.mxu0 0.0
  %251 = vmatpush.msra.mxu0 0.0
  %252 = vmatpush.msra.mxu0 0.0
  %253 = vmatpush.msra.mxu0 0.0
  %254 = vmatpush.msra.mxu0 0.0
  %255 = vmatpush.msra.mxu0 0.0
  %256 = vmatpush.msra.mxu0 0.0
  %257 = vmatpush.msra.mxu0 0.0
  %258 = vmatpush.msra.mxu0 0.0
  %259 = vmatpush.msra.mxu0 %v242
  %260 = vmatpush.msra.mxu0 %v241
  %261 = vmatpush.msra.mxu0 %v240
  %262 = vmatpush.msra.mxu0 %v239
  %263 = vmatmul.f32.gmra.mxu0 %v199
  %v264 = vpop.f32.mrf.mxu0
  %v265 = vadd.f32 %v245, %v264
  %266 = vmatmul.f32.gmra.mxu0 %v202
  %v267 = vpop.f32.mrf.mxu0
  %v268 = vadd.f32 %v245, %v267
  %269 = vmatmul.f32.gmra.mxu0 %v205
  %v270 = vpop.f32.mrf.mxu0
  %v271 = vadd.f32 %v245, %v270
  %272 = vmatmul.f32.gmra.mxu0 %v208
  %v273 = vpop.f32.mrf.mxu0
  %v274 = vadd.f32 %v245, %v273
  %275 = vdwg.mxu0
  %v276 = vld [vmem:[%s7] sm:$0xff]
  %v277 = vld [vmem:[%s7 + $0x8] sm:$0xff]
  %v278 = vld [vmem:[%s7 + $0x10] sm:$0xff]
  %v279 = vld [vmem:[%s7 + $0x18] sm:$0xff]
  %v280 = vld [vmem:[%s8] sm:$0x1]
  %v282 = vperm.slane %v280, 0
  %284 = vmatpush.msra.mxu0 0.0
  %285 = vmatpush.msra.mxu0 0.0
  %286 = vmatpush.msra.mxu0 0.0
  %287 = vmatpush.msra.mxu0 0.0
  %288 = vmatpush.msra.mxu0 0.0
  %289 = vmatpush.msra.mxu0 0.0
  %290 = vmatpush.msra.mxu0 0.0
  %291 = vmatpush.msra.mxu0 0.0
  %292 = vmatpush.msra.mxu0 0.0
  %293 = vmatpush.msra.mxu0 0.0
  %294 = vmatpush.msra.mxu0 0.0
  %295 = vmatpush.msra.mxu0 0.0
  %296 = vmatpush.msra.mxu0 %v279
  %297 = vmatpush.msra.mxu0 %v278
  %298 = vmatpush.msra.mxu0 %v277
  %299 = vmatpush.msra.mxu0 %v276
  %300 = vmatmul.f32.gmra.mxu0 %v199
  %v301 = vpop.f32.mrf.mxu0
  %v302 = vadd.f32 %v282, %v301
  %303 = vmatmul.f32.gmra.mxu0 %v202
  %v304 = vpop.f32.mrf.mxu0
  %v305 = vadd.f32 %v282, %v304
  %306 = vmatmul.f32.gmra.mxu0 %v205
  %v307 = vpop.f32.mrf.mxu0
  %v308 = vadd.f32 %v282, %v307
  %309 = vmatmul.f32.gmra.mxu0 %v208
  %v310 = vpop.f32.mrf.mxu0
  %v311 = vadd.f32 %v282, %v310
  %312 = vdwg.mxu0
  %vm313 = vcmask 64512
  %v315 = vsel %vm313, %v228, 0
  %v318 = vsel %vm313, %v265, 0
  %320 = vmatpush.xpose.msra.mxu0 0.0
  %321 = vmatpush.xpose.msra.mxu0 0.0
  %322 = vmatpush.xpose.msra.mxu0 0.0
  %323 = vmatpush.xpose.msra.mxu0 0.0
  %324 = vmatpush.xpose.msra.mxu0 0.0
  %325 = vmatpush.xpose.msra.mxu0 0.0
  %326 = vmatpush.xpose.msra.mxu0 0.0
  %327 = vmatpush.xpose.msra.mxu0 0.0
  %328 = vmatpush.xpose.msra.mxu0 0.0
  %329 = vmatpush.xpose.msra.mxu0 0.0
  %330 = vmatpush.xpose.msra.mxu0 0.0
  %331 = vmatpush.xpose.msra.mxu0 0.0
  %332 = vmatpush.xpose.msra.mxu0 0.0
  %333 = vmatpush.xpose.msra.mxu0 0.0
  %334 = vmatpush.xpose.msra.mxu0 0.0
  %335 = vmatpush.xpose.msra.mxu0 %v318
  %336 = vmatmul.f32.gmra.mxu0 %v315
  %v337 = vpop.f32.mrf.mxu0
  %v338 = vadd.f32 0.0, %v337
  %339 = vdwg.mxu0
  %v341 = vsel %vm313, %v231, 0
  %v344 = vsel %vm313, %v268, 0
  %346 = vmatpush.xpose.msra.mxu0 0.0
  %347 = vmatpush.xpose.msra.mxu0 0.0
  %348 = vmatpush.xpose.msra.mxu0 0.0
  %349 = vmatpush.xpose.msra.mxu0 0.0
  %350 = vmatpush.xpose.msra.mxu0 0.0
  %351 = vmatpush.xpose.msra.mxu0 0.0
  %352 = vmatpush.xpose.msra.mxu0 0.0
  %353 = vmatpush.xpose.msra.mxu0 0.0
  %354 = vmatpush.xpose.msra.mxu0 0.0
  %355 = vmatpush.xpose.msra.mxu0 0.0
  %356 = vmatpush.xpose.msra.mxu0 0.0
  %357 = vmatpush.xpose.msra.mxu0 0.0
  %358 = vmatpush.xpose.msra.mxu0 0.0
  %359 = vmatpush.xpose.msra.mxu0 0.0
  %360 = vmatpush.xpose.msra.mxu0 0.0
  %361 = vmatpush.xpose.msra.mxu0 %v344
  %362 = vmatmul.f32.gmra.mxu0 %v341
  %v363 = vpop.f32.mrf.mxu0
  %v364 = vadd.f32 0.0, %v363
  %365 = vdwg.mxu0
  %v367 = vsel %vm313, %v234, 0
  %v370 = vsel %vm313, %v271, 0
  %372 = vmatpush.xpose.msra.mxu0 0.0
  %373 = vmatpush.xpose.msra.mxu0 0.0
  %374 = vmatpush.xpose.msra.mxu0 0.0
  %375 = vmatpush.xpose.msra.mxu0 0.0
  %376 = vmatpush.xpose.msra.mxu0 0.0
  %377 = vmatpush.xpose.msra.mxu0 0.0
  %378 = vmatpush.xpose.msra.mxu0 0.0
  %379 = vmatpush.xpose.msra.mxu0 0.0
  %380 = vmatpush.xpose.msra.mxu0 0.0
  %381 = vmatpush.xpose.msra.mxu0 0.0
  %382 = vmatpush.xpose.msra.mxu0 0.0
  %383 = vmatpush.xpose.msra.mxu0 0.0
  %384 = vmatpush.xpose.msra.mxu0 0.0
  %385 = vmatpush.xpose.msra.mxu0 0.0
  %386 = vmatpush.xpose.msra.mxu0 0.0
  %387 = vmatpush.xpose.msra.mxu0 %v370
  %388 = vmatmul.f32.gmra.mxu0 %v367
  %v389 = vpop.f32.mrf.mxu0
  %v390 = vadd.f32 0.0, %v389
  %391 = vdwg.mxu0
  %v393 = vsel %vm313, %v237, 0
  %v396 = vsel %vm313, %v274, 0
  %398 = vmatpush.xpose.msra.mxu0 0.0
  %399 = vmatpush.xpose.msra.mxu0 0.0
  %400 = vmatpush.xpose.msra.mxu0 0.0
  %401 = vmatpush.xpose.msra.mxu0 0.0
  %402 = vmatpush.xpose.msra.mxu0 0.0
  %403 = vmatpush.xpose.msra.mxu0 0.0
  %404 = vmatpush.xpose.msra.mxu0 0.0
  %405 = vmatpush.xpose.msra.mxu0 0.0
  %406 = vmatpush.xpose.msra.mxu0 0.0
  %407 = vmatpush.xpose.msra.mxu0 0.0
  %408 = vmatpush.xpose.msra.mxu0 0.0
  %409 = vmatpush.xpose.msra.mxu0 0.0
  %410 = vmatpush.xpose.msra.mxu0 0.0
  %411 = vmatpush.xpose.msra.mxu0 0.0
  %412 = vmatpush.xpose.msra.mxu0 0.0
  %413 = vmatpush.xpose.msra.mxu0 %v396
  %414 = vmatmul.f32.gmra.mxu0 %v393
  %v415 = vpop.f32.mrf.mxu0
  %v416 = vadd.f32 0.0, %v415
  %417 = vdwg.mxu0
  %v418 = vmul.f32 %v338, 0.35355338
  %v419 = vmul.f32 %v364, 0.35355338
  %v420 = vmul.f32 %v390, 0.35355338
  %v421 = vmul.f32 %v416, 0.35355338
  %v422 = vsel %vm313, %v418, -inf
  %423 = vmax.xlane.f32.xlu0 %v422
  %v424 = vpop.xlane.xlu0 %423
  %v425 = vsel %vm313, %v419, -inf
  %426 = vmax.xlane.f32.xlu0 %v425
  %v427 = vpop.xlane.xlu0 %426
  %v428 = vsel %vm313, %v420, -inf
  %429 = vmax.xlane.f32.xlu0 %v428
  %v430 = vpop.xlane.xlu0 %429
  %v431 = vsel %vm313, %v421, -inf
  %432 = vmax.xlane.f32.xlu0 %v431
  %v433 = vpop.xlane.xlu0 %432
  %v434 = vsub.f32 %v418, %v424
  %v435 = vsub.f32 %v419, %v427
  %v436 = vsub.f32 %v420, %v430
  %v437 = vsub.f32 %v421, %v433
  %v438 = vmul.f32 %v434, 1.442695
  %v439 = vpow.pop %v438
  %v440 = vmul.f32 %v435, 1.442695
  %v441 = vpow.pop %v440
  %v442 = vmul.f32 %v436, 1.442695
  %v443 = vpow.pop %v442
  %v444 = vmul.f32 %v437, 1.442695
  %v445 = vpow.pop %v444
  %v446 = vsel %vm313, %v439, 0.0
  %447 = vadd.xlane.f32.xlu0 %v446
  %v448 = vpop.xlane.xlu0 %447
  %v449 = vsel %vm313, %v441, 0.0
  %450 = vadd.xlane.f32.xlu0 %v449
  %v451 = vpop.xlane.xlu0 %450
  %v452 = vsel %vm313, %v443, 0.0
  %453 = vadd.xlane.f32.xlu0 %v452
  %v454 = vpop.xlane.xlu0 %453
  %v455 = vsel %vm313, %v445, 0.0
  %456 = vadd.xlane.f32.xlu0 %v455
  %v457 = vpop.xlane.xlu0 %456
  %v458 = vrcp.pop %v448
  %v459 = vmul.f32 %v448, %v458
  %v460 = vsub.f32 1.0, %v459
  %v461 = vmul.f32 %v458, %v460
  %v462 = vadd.f32 %v458, %v461
  %vm463 = vweird.f32 %v448
  %vm464 = vweird.f32 %v458
  %vm465 = vmor %vm463, %vm464
  %v466 = vsel %vm465, %v458, %v462
  %v467 = vand.u32 2147483647, %v448
  %vm468 = vcmp.eq.f32.partialorder %v467, 8.507059e+37
  %v469 = vand.u32 %v448, 2147483648
  %v470 = vor.u32 1.1754944e-38, %v469
  %v471 = vsel %vm468, %v470, %v466
  %v472 = vmul.f32 %v439, %v471
  %v473 = vrcp.pop %v451
  %v474 = vmul.f32 %v451, %v473
  %v475 = vsub.f32 1.0, %v474
  %v476 = vmul.f32 %v473, %v475
  %v477 = vadd.f32 %v473, %v476
  %vm478 = vweird.f32 %v451
  %vm479 = vweird.f32 %v473
  %vm480 = vmor %vm478, %vm479
  %v481 = vsel %vm480, %v473, %v477
  %v482 = vand.u32 2147483647, %v451
  %vm483 = vcmp.eq.f32.partialorder %v482, 8.507059e+37
  %v484 = vand.u32 %v451, 2147483648
  %v485 = vor.u32 1.1754944e-38, %v484
  %v486 = vsel %vm483, %v485, %v481
  %v487 = vmul.f32 %v441, %v486
  %v488 = vrcp.pop %v454
  %v489 = vmul.f32 %v454, %v488
  %v490 = vsub.f32 1.0, %v489
  %v491 = vmul.f32 %v488, %v490
  %v492 = vadd.f32 %v488, %v491
  %vm493 = vweird.f32 %v454
  %vm494 = vweird.f32 %v488
  %vm495 = vmor %vm493, %vm494
  %v496 = vsel %vm495, %v488, %v492
  %v497 = vand.u32 2147483647, %v454
  %vm498 = vcmp.eq.f32.partialorder %v497, 8.507059e+37
  %v499 = vand.u32 %v454, 2147483648
  %v500 = vor.u32 1.1754944e-38, %v499
  %v501 = vsel %vm498, %v500, %v496
  %v502 = vmul.f32 %v443, %v501
  %v503 = vrcp.pop %v457
  %v504 = vmul.f32 %v457, %v503
  %v505 = vsub.f32 1.0, %v504
  %v506 = vmul.f32 %v503, %v505
  %v507 = vadd.f32 %v503, %v506
  %vm508 = vweird.f32 %v457
  %vm509 = vweird.f32 %v503
  %vm510 = vmor %vm508, %vm509
  %v511 = vsel %vm510, %v503, %v507
  %v512 = vand.u32 2147483647, %v457
  %vm513 = vcmp.eq.f32.partialorder %v512, 8.507059e+37
  %v514 = vand.u32 %v457, 2147483648
  %v515 = vor.u32 1.1754944e-38, %v514
  %v516 = vsel %vm513, %v515, %v511
  %v517 = vmul.f32 %v445, %v516
  %v519 = vsel %vm313, %v472, 0
  %521 = vmatpush.msra.mxu0 0.0
  %522 = vmatpush.msra.mxu0 0.0
  %523 = vmatpush.msra.mxu0 0.0
  %524 = vmatpush.msra.mxu0 0.0
  %525 = vmatpush.msra.mxu0 0.0
  %526 = vmatpush.msra.mxu0 0.0
  %527 = vmatpush.msra.mxu0 0.0
  %528 = vmatpush.msra.mxu0 0.0
  %529 = vmatpush.msra.mxu0 0.0
  %530 = vmatpush.msra.mxu0 0.0
  %531 = vmatpush.msra.mxu0 0.0
  %532 = vmatpush.msra.mxu0 0.0
  %533 = vmatpush.msra.mxu0 0.0
  %534 = vmatpush.msra.mxu0 0.0
  %535 = vmatpush.msra.mxu0 0.0
  %536 = vmatpush.msra.mxu0 %v302
  %537 = vmatmul.f32.gmra.mxu0 %v519
  %v538 = vpop.f32.mrf.mxu0
  %v539 = vadd.f32 0.0, %v538
  %540 = vdwg.mxu0
  %v542 = vsel %vm313, %v487, 0
  %544 = vmatpush.msra.mxu0 0.0
  %545 = vmatpush.msra.mxu0 0.0
  %546 = vmatpush.msra.mxu0 0.0
  %547 = vmatpush.msra.mxu0 0.0
  %548 = vmatpush.msra.mxu0 0.0
  %549 = vmatpush.msra.mxu0 0.0
  %550 = vmatpush.msra.mxu0 0.0
  %551 = vmatpush.msra.mxu0 0.0
  %552 = vmatpush.msra.mxu0 0.0
  %553 = vmatpush.msra.mxu0 0.0
  %554 = vmatpush.msra.mxu0 0.0
  %555 = vmatpush.msra.mxu0 0.0
  %556 = vmatpush.msra.mxu0 0.0
  %557 = vmatpush.msra.mxu0 0.0
  %558 = vmatpush.msra.mxu0 0.0
  %559 = vmatpush.msra.mxu0 %v305
  %560 = vmatmul.f32.gmra.mxu0 %v542
  %v561 = vpop.f32.mrf.mxu0
  %v562 = vadd.f32 0.0, %v561
  %563 = vdwg.mxu0
  %v565 = vsel %vm313, %v502, 0
  %567 = vmatpush.msra.mxu0 0.0
  %568 = vmatpush.msra.mxu0 0.0
  %569 = vmatpush.msra.mxu0 0.0
  %570 = vmatpush.msra.mxu0 0.0
  %571 = vmatpush.msra.mxu0 0.0
  %572 = vmatpush.msra.mxu0 0.0
  %573 = vmatpush.msra.mxu0 0.0
  %574 = vmatpush.msra.mxu0 0.0
  %575 = vmatpush.msra.mxu0 0.0
  %576 = vmatpush.msra.mxu0 0.0
  %577 = vmatpush.msra.mxu0 0.0
  %578 = vmatpush.msra.mxu0 0.0
  %579 = vmatpush.msra.mxu0 0.0
  %580 = vmatpush.msra.mxu0 0.0
  %581 = vmatpush.msra.mxu0 0.0
  %582 = vmatpush.msra.mxu0 %v308
  %583 = vmatmul.f32.gmra.mxu0 %v565
  %v584 = vpop.f32.mrf.mxu0
  %v585 = vadd.f32 0.0, %v584
  %586 = vdwg.mxu0
  %v588 = vsel %vm313, %v517, 0
  %590 = vmatpush.msra.mxu0 0.0
  %591 = vmatpush.msra.mxu0 0.0
  %592 = vmatpush.msra.mxu0 0.0
  %593 = vmatpush.msra.mxu0 0.0
  %594 = vmatpush.msra.mxu0 0.0
  %595 = vmatpush.msra.mxu0 0.0
  %596 = vmatpush.msra.mxu0 0.0
  %597 = vmatpush.msra.mxu0 0.0
  %598 = vmatpush.msra.mxu0 0.0
  %599 = vmatpush.msra.mxu0 0.0
  %600 = vmatpush.msra.mxu0 0.0
  %601 = vmatpush.msra.mxu0 0.0
  %602 = vmatpush.msra.mxu0 0.0
  %603 = vmatpush.msra.mxu0 0.0
  %604 = vmatpush.msra.mxu0 0.0
  %605 = vmatpush.msra.mxu0 %v311
  %606 = vmatmul.f32.gmra.mxu0 %v588
  %v607 = vpop.f32.mrf.mxu0
  %v608 = vadd.f32 0.0, %v607
  %609 = vdwg.mxu0
  %610 = vrot.lane.b32.xlu0 %v228, 120
  %v611 = vpop.permute.xlu0 %610
  %612 = vrot.lane.b32.xlu0 %v265, 120
  %v613 = vpop.permute.xlu0 %612
  %v614 = vsel %vm313, %v611, 0
  %v616 = vsel %vm313, %v613, 0
  %618 = vmatpush.xpose.msra.mxu0 0.0
  %619 = vmatpush.xpose.msra.mxu0 0.0
  %620 = vmatpush.xpose.msra.mxu0 0.0
  %621 = vmatpush.xpose.msra.mxu0 0.0
  %622 = vmatpush.xpose.msra.mxu0 0.0
  %623 = vmatpush.xpose.msra.mxu0 0.0
  %624 = vmatpush.xpose.msra.mxu0 0.0
  %625 = vmatpush.xpose.msra.mxu0 0.0
  %626 = vmatpush.xpose.msra.mxu0 0.0
  %627 = vmatpush.xpose.msra.mxu0 0.0
  %628 = vmatpush.xpose.msra.mxu0 0.0
  %629 = vmatpush.xpose.msra.mxu0 0.0
  %630 = vmatpush.xpose.msra.mxu0 0.0
  %631 = vmatpush.xpose.msra.mxu0 0.0
  %632 = vmatpush.xpose.msra.mxu0 0.0
  %633 = vmatpush.xpose.msra.mxu0 %v616
  %634 = vmatmul.f32.gmra.mxu0 %v614
  %v635 = vpop.f32.mrf.mxu0
  %v636 = vadd.f32 0.0, %v635
  %637 = vdwg.mxu0
  %638 = vrot.lane.b32.xlu0 %v231, 120
  %v639 = vpop.permute.xlu0 %638
  %640 = vrot.lane.b32.xlu0 %v268, 120
  %v641 = vpop.permute.xlu0 %640
  %v642 = vsel %vm313, %v639, 0
  %v644 = vsel %vm313, %v641, 0
  %646 = vmatpush.xpose.msra.mxu0 0.0
  %647 = vmatpush.xpose.msra.mxu0 0.0
  %648 = vmatpush.xpose.msra.mxu0 0.0
  %649 = vmatpush.xpose.msra.mxu0 0.0
  %650 = vmatpush.xpose.msra.mxu0 0.0
  %651 = vmatpush.xpose.msra.mxu0 0.0
  %652 = vmatpush.xpose.msra.mxu0 0.0
  %653 = vmatpush.xpose.msra.mxu0 0.0
  %654 = vmatpush.xpose.msra.mxu0 0.0
  %655 = vmatpush.xpose.msra.mxu0 0.0
  %656 = vmatpush.xpose.msra.mxu0 0.0
  %657 = vmatpush.xpose.msra.mxu0 0.0
  %658 = vmatpush.xpose.msra.mxu0 0.0
  %659 = vmatpush.xpose.msra.mxu0 0.0
  %660 = vmatpush.xpose.msra.mxu0 0.0
  %661 = vmatpush.xpose.msra.mxu0 %v644
  %662 = vmatmul.f32.gmra.mxu0 %v642
  %v663 = vpop.f32.mrf.mxu0
  %v664 = vadd.f32 0.0, %v663
  %665 = vdwg.mxu0
  %666 = vrot.lane.b32.xlu0 %v234, 120
  %v667 = vpop.permute.xlu0 %666
  %668 = vrot.lane.b32.xlu0 %v271, 120
  %v669 = vpop.permute.xlu0 %668
  %v670 = vsel %vm313, %v667, 0
  %v672 = vsel %vm313, %v669, 0
  %674 = vmatpush.xpose.msra.mxu0 0.0
  %675 = vmatpush.xpose.msra.mxu0 0.0
  %676 = vmatpush.xpose.msra.mxu0 0.0
  %677 = vmatpush.xpose.msra.mxu0 0.0
  %678 = vmatpush.xpose.msra.mxu0 0.0
  %679 = vmatpush.xpose.msra.mxu0 0.0
  %680 = vmatpush.xpose.msra.mxu0 0.0
  %681 = vmatpush.xpose.msra.mxu0 0.0
  %682 = vmatpush.xpose.msra.mxu0 0.0
  %683 = vmatpush.xpose.msra.mxu0 0.0
  %684 = vmatpush.xpose.msra.mxu0 0.0
  %685 = vmatpush.xpose.msra.mxu0 0.0
  %686 = vmatpush.xpose.msra.mxu0 0.0
  %687 = vmatpush.xpose.msra.mxu0 0.0
  %688 = vmatpush.xpose.msra.mxu0 0.0
  %689 = vmatpush.xpose.msra.mxu0 %v672
  %690 = vmatmul.f32.gmra.mxu0 %v670
  %v691 = vpop.f32.mrf.mxu0
  %v692 = vadd.f32 0.0, %v691
  %693 = vdwg.mxu0
  %694 = vrot.lane.b32.xlu0 %v237, 120
  %v695 = vpop.permute.xlu0 %694
  %696 = vrot.lane.b32.xlu0 %v274, 120
  %v697 = vpop.permute.xlu0 %696
  %v698 = vsel %vm313, %v695, 0
  %v700 = vsel %vm313, %v697, 0
  %702 = vmatpush.xpose.msra.mxu0 0.0
  %703 = vmatpush.xpose.msra.mxu0 0.0
  %704 = vmatpush.xpose.msra.mxu0 0.0
  %705 = vmatpush.xpose.msra.mxu0 0.0
  %706 = vmatpush.xpose.msra.mxu0 0.0
  %707 = vmatpush.xpose.msra.mxu0 0.0
  %708 = vmatpush.xpose.msra.mxu0 0.0
  %709 = vmatpush.xpose.msra.mxu0 0.0
  %710 = vmatpush.xpose.msra.mxu0 0.0
  %711 = vmatpush.xpose.msra.mxu0 0.0
  %712 = vmatpush.xpose.msra.mxu0 0.0
  %713 = vmatpush.xpose.msra.mxu0 0.0
  %714 = vmatpush.xpose.msra.mxu0 0.0
  %715 = vmatpush.xpose.msra.mxu0 0.0
  %716 = vmatpush.xpose.msra.mxu0 0.0
  %717 = vmatpush.xpose.msra.mxu0 %v700
  %718 = vmatmul.f32.gmra.mxu0 %v698
  %v719 = vpop.f32.mrf.mxu0
  %v720 = vadd.f32 0.0, %v719
  %721 = vdwg.mxu0
  %v722 = vmul.f32 %v636, 0.35355338
  %v723 = vmul.f32 %v664, 0.35355338
  %v724 = vmul.f32 %v692, 0.35355338
  %v725 = vmul.f32 %v720, 0.35355338
  %v726 = vsel %vm313, %v722, -inf
  %727 = vmax.xlane.f32.xlu0 %v726
  %v728 = vpop.xlane.xlu0 %727
  %v729 = vsel %vm313, %v723, -inf
  %730 = vmax.xlane.f32.xlu0 %v729
  %v731 = vpop.xlane.xlu0 %730
  %v732 = vsel %vm313, %v724, -inf
  %733 = vmax.xlane.f32.xlu0 %v732
  %v734 = vpop.xlane.xlu0 %733
  %v735 = vsel %vm313, %v725, -inf
  %736 = vmax.xlane.f32.xlu0 %v735
  %v737 = vpop.xlane.xlu0 %736
  %v738 = vsub.f32 %v722, %v728
  %v739 = vsub.f32 %v723, %v731
  %v740 = vsub.f32 %v724, %v734
  %v741 = vsub.f32 %v725, %v737
  %v742 = vmul.f32 %v738, 1.442695
  %v743 = vpow.pop %v742
  %v744 = vmul.f32 %v739, 1.442695
  %v745 = vpow.pop %v744
  %v746 = vmul.f32 %v740, 1.442695
  %v747 = vpow.pop %v746
  %v748 = vmul.f32 %v741, 1.442695
  %v749 = vpow.pop %v748
  %v750 = vsel %vm313, %v743, 0.0
  %751 = vadd.xlane.f32.xlu0 %v750
  %v752 = vpop.xlane.xlu0 %751
  %v753 = vsel %vm313, %v745, 0.0
  %754 = vadd.xlane.f32.xlu0 %v753
  %v755 = vpop.xlane.xlu0 %754
  %v756 = vsel %vm313, %v747, 0.0
  %757 = vadd.xlane.f32.xlu0 %v756
  %v758 = vpop.xlane.xlu0 %757
  %v759 = vsel %vm313, %v749, 0.0
  %760 = vadd.xlane.f32.xlu0 %v759
  %v761 = vpop.xlane.xlu0 %760
  %v762 = vrcp.pop %v752
  %v763 = vmul.f32 %v752, %v762
  %v764 = vsub.f32 1.0, %v763
  %v765 = vmul.f32 %v762, %v764
  %v766 = vadd.f32 %v762, %v765
  %vm767 = vweird.f32 %v752
  %vm768 = vweird.f32 %v762
  %vm769 = vmor %vm767, %vm768
  %v770 = vsel %vm769, %v762, %v766
  %v771 = vand.u32 2147483647, %v752
  %vm772 = vcmp.eq.f32.partialorder %v771, 8.507059e+37
  %v773 = vand.u32 %v752, 2147483648
  %v774 = vor.u32 1.1754944e-38, %v773
  %v775 = vsel %vm772, %v774, %v770
  %v776 = vmul.f32 %v743, %v775
  %v777 = vrcp.pop %v755
  %v778 = vmul.f32 %v755, %v777
  %v779 = vsub.f32 1.0, %v778
  %v780 = vmul.f32 %v777, %v779
  %v781 = vadd.f32 %v777, %v780
  %vm782 = vweird.f32 %v755
  %vm783 = vweird.f32 %v777
  %vm784 = vmor %vm782, %vm783
  %v785 = vsel %vm784, %v777, %v781
  %v786 = vand.u32 2147483647, %v755
  %vm787 = vcmp.eq.f32.partialorder %v786, 8.507059e+37
  %v788 = vand.u32 %v755, 2147483648
  %v789 = vor.u32 1.1754944e-38, %v788
  %v790 = vsel %vm787, %v789, %v785
  %v791 = vmul.f32 %v745, %v790
  %v792 = vrcp.pop %v758
  %v793 = vmul.f32 %v758, %v792
  %v794 = vsub.f32 1.0, %v793
  %v795 = vmul.f32 %v792, %v794
  %v796 = vadd.f32 %v792, %v795
  %vm797 = vweird.f32 %v758
  %vm798 = vweird.f32 %v792
  %vm799 = vmor %vm797, %vm798
  %v800 = vsel %vm799, %v792, %v796
  %v801 = vand.u32 2147483647, %v758
  %vm802 = vcmp.eq.f32.partialorder %v801, 8.507059e+37
  %v803 = vand.u32 %v758, 2147483648
  %v804 = vor.u32 1.1754944e-38, %v803
  %v805 = vsel %vm802, %v804, %v800
  %v806 = vmul.f32 %v747, %v805
  %v807 = vrcp.pop %v761
  %v808 = vmul.f32 %v761, %v807
  %v809 = vsub.f32 1.0, %v808
  %v810 = vmul.f32 %v807, %v809
  %v811 = vadd.f32 %v807, %v810
  %vm812 = vweird.f32 %v761
  %vm813 = vweird.f32 %v807
  %vm814 = vmor %vm812, %vm813
  %v815 = vsel %vm814, %v807, %v811
  %v816 = vand.u32 2147483647, %v761
  %vm817 = vcmp.eq.f32.partialorder %v816, 8.507059e+37
  %v818 = vand.u32 %v761, 2147483648
  %v819 = vor.u32 1.1754944e-38, %v818
  %v820 = vsel %vm817, %v819, %v815
  %v821 = vmul.f32 %v749, %v820
  %823 = vrot.lane.b32.xlu0 %v302, 120
  %v824 = vpop.permute.xlu0 %823
  %v827 = vsel %vm313, %v776, 0
  %829 = vmatpush.msra.mxu0 0.0
  %830 = vmatpush.msra.mxu0 0.0
  %831 = vmatpush.msra.mxu0 0.0
  %832 = vmatpush.msra.mxu0 0.0
  %833 = vmatpush.msra.mxu0 0.0
  %834 = vmatpush.msra.mxu0 0.0
  %835 = vmatpush.msra.mxu0 0.0
  %836 = vmatpush.msra.mxu0 0.0
  %837 = vmatpush.msra.mxu0 0.0
  %838 = vmatpush.msra.mxu0 0.0
  %839 = vmatpush.msra.mxu0 0.0
  %840 = vmatpush.msra.mxu0 0.0
  %841 = vmatpush.msra.mxu0 0.0
  %842 = vmatpush.msra.mxu0 0.0
  %843 = vmatpush.msra.mxu0 0.0
  %844 = vmatpush.msra.mxu0 %v824
  %845 = vmatmul.f32.gmra.mxu0 %v827
  %v846 = vpop.f32.mrf.mxu0
  %v847 = vadd.f32 0.0, %v846
  %848 = vdwg.mxu0
  %850 = vrot.lane.b32.xlu0 %v305, 120
  %v851 = vpop.permute.xlu0 %850
  %v854 = vsel %vm313, %v791, 0
  %856 = vmatpush.msra.mxu0 0.0
  %857 = vmatpush.msra.mxu0 0.0
  %858 = vmatpush.msra.mxu0 0.0
  %859 = vmatpush.msra.mxu0 0.0
  %860 = vmatpush.msra.mxu0 0.0
  %861 = vmatpush.msra.mxu0 0.0
  %862 = vmatpush.msra.mxu0 0.0
  %863 = vmatpush.msra.mxu0 0.0
  %864 = vmatpush.msra.mxu0 0.0
  %865 = vmatpush.msra.mxu0 0.0
  %866 = vmatpush.msra.mxu0 0.0
  %867 = vmatpush.msra.mxu0 0.0
  %868 = vmatpush.msra.mxu0 0.0
  %869 = vmatpush.msra.mxu0 0.0
  %870 = vmatpush.msra.mxu0 0.0
  %871 = vmatpush.msra.mxu0 %v851
  %872 = vmatmul.f32.gmra.mxu0 %v854
  %v873 = vpop.f32.mrf.mxu0
  %v874 = vadd.f32 0.0, %v873
  %875 = vdwg.mxu0
  %877 = vrot.lane.b32.xlu0 %v308, 120
  %v878 = vpop.permute.xlu0 %877
  %v881 = vsel %vm313, %v806, 0
  %883 = vmatpush.msra.mxu0 0.0
  %884 = vmatpush.msra.mxu0 0.0
  %885 = vmatpush.msra.mxu0 0.0
  %886 = vmatpush.msra.mxu0 0.0
  %887 = vmatpush.msra.mxu0 0.0
  %888 = vmatpush.msra.mxu0 0.0
  %889 = vmatpush.msra.mxu0 0.0
  %890 = vmatpush.msra.mxu0 0.0
  %891 = vmatpush.msra.mxu0 0.0
  %892 = vmatpush.msra.mxu0 0.0
  %893 = vmatpush.msra.mxu0 0.0
  %894 = vmatpush.msra.mxu0 0.0
  %895 = vmatpush.msra.mxu0 0.0
  %896 = vmatpush.msra.mxu0 0.0
  %897 = vmatpush.msra.mxu0 0.0
  %898 = vmatpush.msra.mxu0 %v878
  %899 = vmatmul.f32.gmra.mxu0 %v881
  %v900 = vpop.f32.mrf.mxu0
  %v901 = vadd.f32 0.0, %v900
  %902 = vdwg.mxu0
  %904 = vrot.lane.b32.xlu0 %v311, 120
  %v905 = vpop.permute.xlu0 %904
  %v908 = vsel %vm313, %v821, 0
  %910 = vmatpush.msra.mxu0 0.0
  %911 = vmatpush.msra.mxu0 0.0
  %912 = vmatpush.msra.mxu0 0.0
  %913 = vmatpush.msra.mxu0 0.0
  %914 = vmatpush.msra.mxu0 0.0
  %915 = vmatpush.msra.mxu0 0.0
  %916 = vmatpush.msra.mxu0 0.0
  %917 = vmatpush.msra.mxu0 0.0
  %918 = vmatpush.msra.mxu0 0.0
  %919 = vmatpush.msra.mxu0 0.0
  %920 = vmatpush.msra.mxu0 0.0
  %921 = vmatpush.msra.mxu0 0.0
  %922 = vmatpush.msra.mxu0 0.0
  %923 = vmatpush.msra.mxu0 0.0
  %924 = vmatpush.msra.mxu0 0.0
  %925 = vmatpush.msra.mxu0 %v905
  %926 = vmatmul.f32.gmra.mxu0 %v908
  %v927 = vpop.f32.mrf.mxu0
  %v928 = vadd.f32 0.0, %v927
  %929 = vdwg.mxu0
  %930 = vrot.lane.b32.xlu0 %v228, 112
  %v931 = vpop.permute.xlu0 %930
  %932 = vrot.lane.b32.xlu0 %v265, 112
  %v933 = vpop.permute.xlu0 %932
  %v934 = vsel %vm313, %v931, 0
  %v936 = vsel %vm313, %v933, 0
  %938 = vmatpush.xpose.msra.mxu0 0.0
  %939 = vmatpush.xpose.msra.mxu0 0.0
  %940 = vmatpush.xpose.msra.mxu0 0.0
  %941 = vmatpush.xpose.msra.mxu0 0.0
  %942 = vmatpush.xpose.msra.mxu0 0.0
  %943 = vmatpush.xpose.msra.mxu0 0.0
  %944 = vmatpush.xpose.msra.mxu0 0.0
  %945 = vmatpush.xpose.msra.mxu0 0.0
  %946 = vmatpush.xpose.msra.mxu0 0.0
  %947 = vmatpush.xpose.msra.mxu0 0.0
  %948 = vmatpush.xpose.msra.mxu0 0.0
  %949 = vmatpush.xpose.msra.mxu0 0.0
  %950 = vmatpush.xpose.msra.mxu0 0.0
  %951 = vmatpush.xpose.msra.mxu0 0.0
  %952 = vmatpush.xpose.msra.mxu0 0.0
  %953 = vmatpush.xpose.msra.mxu0 %v936
  %954 = vmatmul.f32.gmra.mxu0 %v934
  %v955 = vpop.f32.mrf.mxu0
  %v956 = vadd.f32 0.0, %v955
  %957 = vdwg.mxu0
  %958 = vrot.lane.b32.xlu0 %v231, 112
  %v959 = vpop.permute.xlu0 %958
  %960 = vrot.lane.b32.xlu0 %v268, 112
  %v961 = vpop.permute.xlu0 %960
  %v962 = vsel %vm313, %v959, 0
  %v964 = vsel %vm313, %v961, 0
  %966 = vmatpush.xpose.msra.mxu0 0.0
  %967 = vmatpush.xpose.msra.mxu0 0.0
  %968 = vmatpush.xpose.msra.mxu0 0.0
  %969 = vmatpush.xpose.msra.mxu0 0.0
  %970 = vmatpush.xpose.msra.mxu0 0.0
  %971 = vmatpush.xpose.msra.mxu0 0.0
  %972 = vmatpush.xpose.msra.mxu0 0.0
  %973 = vmatpush.xpose.msra.mxu0 0.0
  %974 = vmatpush.xpose.msra.mxu0 0.0
  %975 = vmatpush.xpose.msra.mxu0 0.0
  %976 = vmatpush.xpose.msra.mxu0 0.0
  %977 = vmatpush.xpose.msra.mxu0 0.0
  %978 = vmatpush.xpose.msra.mxu0 0.0
  %979 = vmatpush.xpose.msra.mxu0 0.0
  %980 = vmatpush.xpose.msra.mxu0 0.0
  %981 = vmatpush.xpose.msra.mxu0 %v964
  %982 = vmatmul.f32.gmra.mxu0 %v962
  %v983 = vpop.f32.mrf.mxu0
  %v984 = vadd.f32 0.0, %v983
  %985 = vdwg.mxu0
  %986 = vrot.lane.b32.xlu0 %v234, 112
  %v987 = vpop.permute.xlu0 %986
  %988 = vrot.lane.b32.xlu0 %v271, 112
  %v989 = vpop.permute.xlu0 %988
  %v990 = vsel %vm313, %v987, 0
  %v992 = vsel %vm313, %v989, 0
  %994 = vmatpush.xpose.msra.mxu0 0.0
  %995 = vmatpush.xpose.msra.mxu0 0.0
  %996 = vmatpush.xpose.msra.mxu0 0.0
  %997 = vmatpush.xpose.msra.mxu0 0.0
  %998 = vmatpush.xpose.msra.mxu0 0.0
  %999 = vmatpush.xpose.msra.mxu0 0.0
  %1000 = vmatpush.xpose.msra.mxu0 0.0
  %1001 = vmatpush.xpose.msra.mxu0 0.0
  %1002 = vmatpush.xpose.msra.mxu0 0.0
  %1003 = vmatpush.xpose.msra.mxu0 0.0
  %1004 = vmatpush.xpose.msra.mxu0 0.0
  %1005 = vmatpush.xpose.msra.mxu0 0.0
  %1006 = vmatpush.xpose.msra.mxu0 0.0
  %1007 = vmatpush.xpose.msra.mxu0 0.0
  %1008 = vmatpush.xpose.msra.mxu0 0.0
  %1009 = vmatpush.xpose.msra.mxu0 %v992
  %1010 = vmatmul.f32.gmra.mxu0 %v990
  %v1011 = vpop.f32.mrf.mxu0
  %v1012 = vadd.f32 0.0, %v1011
  %1013 = vdwg.mxu0
  %1014 = vrot.lane.b32.xlu0 %v237, 112
  %v1015 = vpop.permute.xlu0 %1014
  %1016 = vrot.lane.b32.xlu0 %v274, 112
  %v1017 = vpop.permute.xlu0 %1016
  %v1018 = vsel %vm313, %v1015, 0
  %v1020 = vsel %vm313, %v1017, 0
  %1022 = vmatpush.xpose.msra.mxu0 0.0
  %1023 = vmatpush.xpose.msra.mxu0 0.0
  %1024 = vmatpush.xpose.msra.mxu0 0.0
  %1025 = vmatpush.xpose.msra.mxu0 0.0
  %1026 = vmatpush.xpose.msra.mxu0 0.0
  %1027 = vmatpush.xpose.msra.mxu0 0.0
  %1028 = vmatpush.xpose.msra.mxu0 0.0
  %1029 = vmatpush.xpose.msra.mxu0 0.0
  %1030 = vmatpush.xpose.msra.mxu0 0.0
  %1031 = vmatpush.xpose.msra.mxu0 0.0
  %1032 = vmatpush.xpose.msra.mxu0 0.0
  %1033 = vmatpush.xpose.msra.mxu0 0.0
  %1034 = vmatpush.xpose.msra.mxu0 0.0
  %1035 = vmatpush.xpose.msra.mxu0 0.0
  %1036 = vmatpush.xpose.msra.mxu0 0.0
  %1037 = vmatpush.xpose.msra.mxu0 %v1020
  %1038 = vmatmul.f32.gmra.mxu0 %v1018
  %v1039 = vpop.f32.mrf.mxu0
  %v1040 = vadd.f32 0.0, %v1039
  %1041 = vdwg.mxu0
  %v1042 = vmul.f32 %v956, 0.35355338
  %v1043 = vmul.f32 %v984, 0.35355338
  %v1044 = vmul.f32 %v1012, 0.35355338
  %v1045 = vmul.f32 %v1040, 0.35355338
  %v1046 = vsel %vm313, %v1042, -inf
  %1047 = vmax.xlane.f32.xlu0 %v1046
  %v1048 = vpop.xlane.xlu0 %1047
  %v1049 = vsel %vm313, %v1043, -inf
  %1050 = vmax.xlane.f32.xlu0 %v1049
  %v1051 = vpop.xlane.xlu0 %1050
  %v1052 = vsel %vm313, %v1044, -inf
  %1053 = vmax.xlane.f32.xlu0 %v1052
  %v1054 = vpop.xlane.xlu0 %1053
  %v1055 = vsel %vm313, %v1045, -inf
  %1056 = vmax.xlane.f32.xlu0 %v1055
  %v1057 = vpop.xlane.xlu0 %1056
  %v1058 = vsub.f32 %v1042, %v1048
  %v1059 = vsub.f32 %v1043, %v1051
  %v1060 = vsub.f32 %v1044, %v1054
  %v1061 = vsub.f32 %v1045, %v1057
  %v1062 = vmul.f32 %v1058, 1.442695
  %v1063 = vpow.pop %v1062
  %v1064 = vmul.f32 %v1059, 1.442695
  %v1065 = vpow.pop %v1064
  %v1066 = vmul.f32 %v1060, 1.442695
  %v1067 = vpow.pop %v1066
  %v1068 = vmul.f32 %v1061, 1.442695
  %v1069 = vpow.pop %v1068
  %v1070 = vsel %vm313, %v1063, 0.0
  %1071 = vadd.xlane.f32.xlu0 %v1070
  %v1072 = vpop.xlane.xlu0 %1071
  %v1073 = vsel %vm313, %v1065, 0.0
  %1074 = vadd.xlane.f32.xlu0 %v1073
  %v1075 = vpop.xlane.xlu0 %1074
  %v1076 = vsel %vm313, %v1067, 0.0
  %1077 = vadd.xlane.f32.xlu0 %v1076
  %v1078 = vpop.xlane.xlu0 %1077
  %v1079 = vsel %vm313, %v1069, 0.0
  %1080 = vadd.xlane.f32.xlu0 %v1079
  %v1081 = vpop.xlane.xlu0 %1080
  %v1082 = vrcp.pop %v1072
  %v1083 = vmul.f32 %v1072, %v1082
  %v1084 = vsub.f32 1.0, %v1083
  %v1085 = vmul.f32 %v1082, %v1084
  %v1086 = vadd.f32 %v1082, %v1085
  %vm1087 = vweird.f32 %v1072
  %vm1088 = vweird.f32 %v1082
  %vm1089 = vmor %vm1087, %vm1088
  %v1090 = vsel %vm1089, %v1082, %v1086
  %v1091 = vand.u32 2147483647, %v1072
  %vm1092 = vcmp.eq.f32.partialorder %v1091, 8.507059e+37
  %v1093 = vand.u32 %v1072, 2147483648
  %v1094 = vor.u32 1.1754944e-38, %v1093
  %v1095 = vsel %vm1092, %v1094, %v1090
  %v1096 = vmul.f32 %v1063, %v1095
  %v1097 = vrcp.pop %v1075
  %v1098 = vmul.f32 %v1075, %v1097
  %v1099 = vsub.f32 1.0, %v1098
  %v1100 = vmul.f32 %v1097, %v1099
  %v1101 = vadd.f32 %v1097, %v1100
  %vm1102 = vweird.f32 %v1075
  %vm1103 = vweird.f32 %v1097
  %vm1104 = vmor %vm1102, %vm1103
  %v1105 = vsel %vm1104, %v1097, %v1101
  %v1106 = vand.u32 2147483647, %v1075
  %vm1107 = vcmp.eq.f32.partialorder %v1106, 8.507059e+37
  %v1108 = vand.u32 %v1075, 2147483648
  %v1109 = vor.u32 1.1754944e-38, %v1108
  %v1110 = vsel %vm1107, %v1109, %v1105
  %v1111 = vmul.f32 %v1065, %v1110
  %v1112 = vrcp.pop %v1078
  %v1113 = vmul.f32 %v1078, %v1112
  %v1114 = vsub.f32 1.0, %v1113
  %v1115 = vmul.f32 %v1112, %v1114
  %v1116 = vadd.f32 %v1112, %v1115
  %vm1117 = vweird.f32 %v1078
  %vm1118 = vweird.f32 %v1112
  %vm1119 = vmor %vm1117, %vm1118
  %v1120 = vsel %vm1119, %v1112, %v1116
  %v1121 = vand.u32 2147483647, %v1078
  %vm1122 = vcmp.eq.f32.partialorder %v1121, 8.507059e+37
  %v1123 = vand.u32 %v1078, 2147483648
  %v1124 = vor.u32 1.1754944e-38, %v1123
  %v1125 = vsel %vm1122, %v1124, %v1120
  %v1126 = vmul.f32 %v1067, %v1125
  %v1127 = vrcp.pop %v1081
  %v1128 = vmul.f32 %v1081, %v1127
  %v1129 = vsub.f32 1.0, %v1128
  %v1130 = vmul.f32 %v1127, %v1129
  %v1131 = vadd.f32 %v1127, %v1130
  %vm1132 = vweird.f32 %v1081
  %vm1133 = vweird.f32 %v1127
  %vm1134 = vmor %vm1132, %vm1133
  %v1135 = vsel %vm1134, %v1127, %v1131
  %v1136 = vand.u32 2147483647, %v1081
  %vm1137 = vcmp.eq.f32.partialorder %v1136, 8.507059e+37
  %v1138 = vand.u32 %v1081, 2147483648
  %v1139 = vor.u32 1.1754944e-38, %v1138
  %v1140 = vsel %vm1137, %v1139, %v1135
  %v1141 = vmul.f32 %v1069, %v1140
  %1142 = vrot.lane.b32.xlu0 %v302, 112
  %v1143 = vpop.permute.xlu0 %1142
  %v1146 = vsel %vm313, %v1096, 0
  %1148 = vmatpush.msra.mxu0 0.0
  %1149 = vmatpush.msra.mxu0 0.0
  %1150 = vmatpush.msra.mxu0 0.0
  %1151 = vmatpush.msra.mxu0 0.0
  %1152 = vmatpush.msra.mxu0 0.0
  %1153 = vmatpush.msra.mxu0 0.0
  %1154 = vmatpush.msra.mxu0 0.0
  %1155 = vmatpush.msra.mxu0 0.0
  %1156 = vmatpush.msra.mxu0 0.0
  %1157 = vmatpush.msra.mxu0 0.0
  %1158 = vmatpush.msra.mxu0 0.0
  %1159 = vmatpush.msra.mxu0 0.0
  %1160 = vmatpush.msra.mxu0 0.0
  %1161 = vmatpush.msra.mxu0 0.0
  %1162 = vmatpush.msra.mxu0 0.0
  %1163 = vmatpush.msra.mxu0 %v1143
  %1164 = vmatmul.f32.gmra.mxu0 %v1146
  %v1165 = vpop.f32.mrf.mxu0
  %v1166 = vadd.f32 0.0, %v1165
  %1167 = vdwg.mxu0
  %1168 = vrot.lane.b32.xlu0 %v305, 112
  %v1169 = vpop.permute.xlu0 %1168
  %v1172 = vsel %vm313, %v1111, 0
  %1174 = vmatpush.msra.mxu0 0.0
  %1175 = vmatpush.msra.mxu0 0.0
  %1176 = vmatpush.msra.mxu0 0.0
  %1177 = vmatpush.msra.mxu0 0.0
  %1178 = vmatpush.msra.mxu0 0.0
  %1179 = vmatpush.msra.mxu0 0.0
  %1180 = vmatpush.msra.mxu0 0.0
  %1181 = vmatpush.msra.mxu0 0.0
  %1182 = vmatpush.msra.mxu0 0.0
  %1183 = vmatpush.msra.mxu0 0.0
  %1184 = vmatpush.msra.mxu0 0.0
  %1185 = vmatpush.msra.mxu0 0.0
  %1186 = vmatpush.msra.mxu0 0.0
  %1187 = vmatpush.msra.mxu0 0.0
  %1188 = vmatpush.msra.mxu0 0.0
  %1189 = vmatpush.msra.mxu0 %v1169
  %1190 = vmatmul.f32.gmra.mxu0 %v1172
  %v1191 = vpop.f32.mrf.mxu0
  %v1192 = vadd.f32 0.0, %v1191
  %1193 = vdwg.mxu0
  %1194 = vrot.lane.b32.xlu0 %v308, 112
  %v1195 = vpop.permute.xlu0 %1194
  %v1198 = vsel %vm313, %v1126, 0
  %1200 = vmatpush.msra.mxu0 0.0
  %1201 = vmatpush.msra.mxu0 0.0
  %1202 = vmatpush.msra.mxu0 0.0
  %1203 = vmatpush.msra.mxu0 0.0
  %1204 = vmatpush.msra.mxu0 0.0
  %1205 = vmatpush.msra.mxu0 0.0
  %1206 = vmatpush.msra.mxu0 0.0
  %1207 = vmatpush.msra.mxu0 0.0
  %1208 = vmatpush.msra.mxu0 0.0
  %1209 = vmatpush.msra.mxu0 0.0
  %1210 = vmatpush.msra.mxu0 0.0
  %1211 = vmatpush.msra.mxu0 0.0
  %1212 = vmatpush.msra.mxu0 0.0
  %1213 = vmatpush.msra.mxu0 0.0
  %1214 = vmatpush.msra.mxu0 0.0
  %1215 = vmatpush.msra.mxu0 %v1195
  %1216 = vmatmul.f32.gmra.mxu0 %v1198
  %v1217 = vpop.f32.mrf.mxu0
  %v1218 = vadd.f32 0.0, %v1217
  %1219 = vdwg.mxu0
  %1220 = vrot.lane.b32.xlu0 %v311, 112
  %v1221 = vpop.permute.xlu0 %1220
  %v1224 = vsel %vm313, %v1141, 0
  %1226 = vmatpush.msra.mxu0 0.0
  %1227 = vmatpush.msra.mxu0 0.0
  %1228 = vmatpush.msra.mxu0 0.0
  %1229 = vmatpush.msra.mxu0 0.0
  %1230 = vmatpush.msra.mxu0 0.0
  %1231 = vmatpush.msra.mxu0 0.0
  %1232 = vmatpush.msra.mxu0 0.0
  %1233 = vmatpush.msra.mxu0 0.0
  %1234 = vmatpush.msra.mxu0 0.0
  %1235 = vmatpush.msra.mxu0 0.0
  %1236 = vmatpush.msra.mxu0 0.0
  %1237 = vmatpush.msra.mxu0 0.0
  %1238 = vmatpush.msra.mxu0 0.0
  %1239 = vmatpush.msra.mxu0 0.0
  %1240 = vmatpush.msra.mxu0 0.0
  %1241 = vmatpush.msra.mxu0 %v1221
  %1242 = vmatmul.f32.gmra.mxu0 %v1224
  %v1243 = vpop.f32.mrf.mxu0
  %v1244 = vadd.f32 0.0, %v1243
  %1245 = vdwg.mxu0
  %1246 = vrot.lane.b32.xlu0 %v228, 104
  %v1247 = vpop.permute.xlu0 %1246
  %1248 = vrot.lane.b32.xlu0 %v265, 104
  %v1249 = vpop.permute.xlu0 %1248
  %v1250 = vsel %vm313, %v1247, 0
  %v1252 = vsel %vm313, %v1249, 0
  %1254 = vmatpush.xpose.msra.mxu0 0.0
  %1255 = vmatpush.xpose.msra.mxu0 0.0
  %1256 = vmatpush.xpose.msra.mxu0 0.0
  %1257 = vmatpush.xpose.msra.mxu0 0.0
  %1258 = vmatpush.xpose.msra.mxu0 0.0
  %1259 = vmatpush.xpose.msra.mxu0 0.0
  %1260 = vmatpush.xpose.msra.mxu0 0.0
  %1261 = vmatpush.xpose.msra.mxu0 0.0
  %1262 = vmatpush.xpose.msra.mxu0 0.0
  %1263 = vmatpush.xpose.msra.mxu0 0.0
  %1264 = vmatpush.xpose.msra.mxu0 0.0
  %1265 = vmatpush.xpose.msra.mxu0 0.0
  %1266 = vmatpush.xpose.msra.mxu0 0.0
  %1267 = vmatpush.xpose.msra.mxu0 0.0
  %1268 = vmatpush.xpose.msra.mxu0 0.0
  %1269 = vmatpush.xpose.msra.mxu0 %v1252
  %1270 = vmatmul.f32.gmra.mxu0 %v1250
  %v1271 = vpop.f32.mrf.mxu0
  %v1272 = vadd.f32 0.0, %v1271
  %1273 = vdwg.mxu0
  %1274 = vrot.lane.b32.xlu0 %v231, 104
  %v1275 = vpop.permute.xlu0 %1274
  %1276 = vrot.lane.b32.xlu0 %v268, 104
  %v1277 = vpop.permute.xlu0 %1276
  %v1278 = vsel %vm313, %v1275, 0
  %v1280 = vsel %vm313, %v1277, 0
  %1282 = vmatpush.xpose.msra.mxu0 0.0
  %1283 = vmatpush.xpose.msra.mxu0 0.0
  %1284 = vmatpush.xpose.msra.mxu0 0.0
  %1285 = vmatpush.xpose.msra.mxu0 0.0
  %1286 = vmatpush.xpose.msra.mxu0 0.0
  %1287 = vmatpush.xpose.msra.mxu0 0.0
  %1288 = vmatpush.xpose.msra.mxu0 0.0
  %1289 = vmatpush.xpose.msra.mxu0 0.0
  %1290 = vmatpush.xpose.msra.mxu0 0.0
  %1291 = vmatpush.xpose.msra.mxu0 0.0
  %1292 = vmatpush.xpose.msra.mxu0 0.0
  %1293 = vmatpush.xpose.msra.mxu0 0.0
  %1294 = vmatpush.xpose.msra.mxu0 0.0
  %1295 = vmatpush.xpose.msra.mxu0 0.0
  %1296 = vmatpush.xpose.msra.mxu0 0.0
  %1297 = vmatpush.xpose.msra.mxu0 %v1280
  %1298 = vmatmul.f32.gmra.mxu0 %v1278
  %v1299 = vpop.f32.mrf.mxu0
  %v1300 = vadd.f32 0.0, %v1299
  %1301 = vdwg.mxu0
  %1302 = vrot.lane.b32.xlu0 %v234, 104
  %v1303 = vpop.permute.xlu0 %1302
  %1304 = vrot.lane.b32.xlu0 %v271, 104
  %v1305 = vpop.permute.xlu0 %1304
  %v1306 = vsel %vm313, %v1303, 0
  %v1308 = vsel %vm313, %v1305, 0
  %1310 = vmatpush.xpose.msra.mxu0 0.0
  %1311 = vmatpush.xpose.msra.mxu0 0.0
  %1312 = vmatpush.xpose.msra.mxu0 0.0
  %1313 = vmatpush.xpose.msra.mxu0 0.0
  %1314 = vmatpush.xpose.msra.mxu0 0.0
  %1315 = vmatpush.xpose.msra.mxu0 0.0
  %1316 = vmatpush.xpose.msra.mxu0 0.0
  %1317 = vmatpush.xpose.msra.mxu0 0.0
  %1318 = vmatpush.xpose.msra.mxu0 0.0
  %1319 = vmatpush.xpose.msra.mxu0 0.0
  %1320 = vmatpush.xpose.msra.mxu0 0.0
  %1321 = vmatpush.xpose.msra.mxu0 0.0
  %1322 = vmatpush.xpose.msra.mxu0 0.0
  %1323 = vmatpush.xpose.msra.mxu0 0.0
  %1324 = vmatpush.xpose.msra.mxu0 0.0
  %1325 = vmatpush.xpose.msra.mxu0 %v1308
  %1326 = vmatmul.f32.gmra.mxu0 %v1306
  %v1327 = vpop.f32.mrf.mxu0
  %v1328 = vadd.f32 0.0, %v1327
  %1329 = vdwg.mxu0
  %1330 = vrot.lane.b32.xlu0 %v237, 104
  %v1331 = vpop.permute.xlu0 %1330
  %1332 = vrot.lane.b32.xlu0 %v274, 104
  %v1333 = vpop.permute.xlu0 %1332
  %v1334 = vsel %vm313, %v1331, 0
  %v1336 = vsel %vm313, %v1333, 0
  %1338 = vmatpush.xpose.msra.mxu0 0.0
  %1339 = vmatpush.xpose.msra.mxu0 0.0
  %1340 = vmatpush.xpose.msra.mxu0 0.0
  %1341 = vmatpush.xpose.msra.mxu0 0.0
  %1342 = vmatpush.xpose.msra.mxu0 0.0
  %1343 = vmatpush.xpose.msra.mxu0 0.0
  %1344 = vmatpush.xpose.msra.mxu0 0.0
  %1345 = vmatpush.xpose.msra.mxu0 0.0
  %1346 = vmatpush.xpose.msra.mxu0 0.0
  %1347 = vmatpush.xpose.msra.mxu0 0.0
  %1348 = vmatpush.xpose.msra.mxu0 0.0
  %1349 = vmatpush.xpose.msra.mxu0 0.0
  %1350 = vmatpush.xpose.msra.mxu0 0.0
  %1351 = vmatpush.xpose.msra.mxu0 0.0
  %1352 = vmatpush.xpose.msra.mxu0 0.0
  %1353 = vmatpush.xpose.msra.mxu0 %v1336
  %1354 = vmatmul.f32.gmra.mxu0 %v1334
  %v1355 = vpop.f32.mrf.mxu0
  %v1356 = vadd.f32 0.0, %v1355
  %1357 = vdwg.mxu0
  %v1358 = vmul.f32 %v1272, 0.35355338
  %v1359 = vmul.f32 %v1300, 0.35355338
  %v1360 = vmul.f32 %v1328, 0.35355338
  %v1361 = vmul.f32 %v1356, 0.35355338
  %v1362 = vsel %vm313, %v1358, -inf
  %1363 = vmax.xlane.f32.xlu0 %v1362
  %v1364 = vpop.xlane.xlu0 %1363
  %v1365 = vsel %vm313, %v1359, -inf
  %1366 = vmax.xlane.f32.xlu0 %v1365
  %v1367 = vpop.xlane.xlu0 %1366
  %v1368 = vsel %vm313, %v1360, -inf
  %1369 = vmax.xlane.f32.xlu0 %v1368
  %v1370 = vpop.xlane.xlu0 %1369
  %v1371 = vsel %vm313, %v1361, -inf
  %1372 = vmax.xlane.f32.xlu0 %v1371
  %v1373 = vpop.xlane.xlu0 %1372
  %v1374 = vsub.f32 %v1358, %v1364
  %v1375 = vsub.f32 %v1359, %v1367
  %v1376 = vsub.f32 %v1360, %v1370
  %v1377 = vsub.f32 %v1361, %v1373
  %v1378 = vmul.f32 %v1374, 1.442695
  %v1379 = vpow.pop %v1378
  %v1380 = vmul.f32 %v1375, 1.442695
  %v1381 = vpow.pop %v1380
  %v1382 = vmul.f32 %v1376, 1.442695
  %v1383 = vpow.pop %v1382
  %v1384 = vmul.f32 %v1377, 1.442695
  %v1385 = vpow.pop %v1384
  %v1386 = vsel %vm313, %v1379, 0.0
  %1387 = vadd.xlane.f32.xlu0 %v1386
  %v1388 = vpop.xlane.xlu0 %1387
  %v1389 = vsel %vm313, %v1381, 0.0
  %1390 = vadd.xlane.f32.xlu0 %v1389
  %v1391 = vpop.xlane.xlu0 %1390
  %v1392 = vsel %vm313, %v1383, 0.0
  %1393 = vadd.xlane.f32.xlu0 %v1392
  %v1394 = vpop.xlane.xlu0 %1393
  %v1395 = vsel %vm313, %v1385, 0.0
  %1396 = vadd.xlane.f32.xlu0 %v1395
  %v1397 = vpop.xlane.xlu0 %1396
  %v1398 = vrcp.pop %v1388
  %v1399 = vmul.f32 %v1388, %v1398
  %v1400 = vsub.f32 1.0, %v1399
  %v1401 = vmul.f32 %v1398, %v1400
  %v1402 = vadd.f32 %v1398, %v1401
  %vm1403 = vweird.f32 %v1388
  %vm1404 = vweird.f32 %v1398
  %vm1405 = vmor %vm1403, %vm1404
  %v1406 = vsel %vm1405, %v1398, %v1402
  %v1407 = vand.u32 2147483647, %v1388
  %vm1408 = vcmp.eq.f32.partialorder %v1407, 8.507059e+37
  %v1409 = vand.u32 %v1388, 2147483648
  %v1410 = vor.u32 1.1754944e-38, %v1409
  %v1411 = vsel %vm1408, %v1410, %v1406
  %v1412 = vmul.f32 %v1379, %v1411
  %v1413 = vrcp.pop %v1391
  %v1414 = vmul.f32 %v1391, %v1413
  %v1415 = vsub.f32 1.0, %v1414
  %v1416 = vmul.f32 %v1413, %v1415
  %v1417 = vadd.f32 %v1413, %v1416
  %vm1418 = vweird.f32 %v1391
  %vm1419 = vweird.f32 %v1413
  %vm1420 = vmor %vm1418, %vm1419
  %v1421 = vsel %vm1420, %v1413, %v1417
  %v1422 = vand.u32 2147483647, %v1391
  %vm1423 = vcmp.eq.f32.partialorder %v1422, 8.507059e+37
  %v1424 = vand.u32 %v1391, 2147483648
  %v1425 = vor.u32 1.1754944e-38, %v1424
  %v1426 = vsel %vm1423, %v1425, %v1421
  %v1427 = vmul.f32 %v1381, %v1426
  %v1428 = vrcp.pop %v1394
  %v1429 = vmul.f32 %v1394, %v1428
  %v1430 = vsub.f32 1.0, %v1429
  %v1431 = vmul.f32 %v1428, %v1430
  %v1432 = vadd.f32 %v1428, %v1431
  %vm1433 = vweird.f32 %v1394
  %vm1434 = vweird.f32 %v1428
  %vm1435 = vmor %vm1433, %vm1434
  %v1436 = vsel %vm1435, %v1428, %v1432
  %v1437 = vand.u32 2147483647, %v1394
  %vm1438 = vcmp.eq.f32.partialorder %v1437, 8.507059e+37
  %v1439 = vand.u32 %v1394, 2147483648
  %v1440 = vor.u32 1.1754944e-38, %v1439
  %v1441 = vsel %vm1438, %v1440, %v1436
  %v1442 = vmul.f32 %v1383, %v1441
  %v1443 = vrcp.pop %v1397
  %v1444 = vmul.f32 %v1397, %v1443
  %v1445 = vsub.f32 1.0, %v1444
  %v1446 = vmul.f32 %v1443, %v1445
  %v1447 = vadd.f32 %v1443, %v1446
  %vm1448 = vweird.f32 %v1397
  %vm1449 = vweird.f32 %v1443
  %vm1450 = vmor %vm1448, %vm1449
  %v1451 = vsel %vm1450, %v1443, %v1447
  %v1452 = vand.u32 2147483647, %v1397
  %vm1453 = vcmp.eq.f32.partialorder %v1452, 8.507059e+37
  %v1454 = vand.u32 %v1397, 2147483648
  %v1455 = vor.u32 1.1754944e-38, %v1454
  %v1456 = vsel %vm1453, %v1455, %v1451
  %v1457 = vmul.f32 %v1385, %v1456
  %1458 = vrot.lane.b32.xlu0 %v302, 104
  %v1459 = vpop.permute.xlu0 %1458
  %v1462 = vsel %vm313, %v1412, 0
  %1464 = vmatpush.msra.mxu0 0.0
  %1465 = vmatpush.msra.mxu0 0.0
  %1466 = vmatpush.msra.mxu0 0.0
  %1467 = vmatpush.msra.mxu0 0.0
  %1468 = vmatpush.msra.mxu0 0.0
  %1469 = vmatpush.msra.mxu0 0.0
  %1470 = vmatpush.msra.mxu0 0.0
  %1471 = vmatpush.msra.mxu0 0.0
  %1472 = vmatpush.msra.mxu0 0.0
  %1473 = vmatpush.msra.mxu0 0.0
  %1474 = vmatpush.msra.mxu0 0.0
  %1475 = vmatpush.msra.mxu0 0.0
  %1476 = vmatpush.msra.mxu0 0.0
  %1477 = vmatpush.msra.mxu0 0.0
  %1478 = vmatpush.msra.mxu0 0.0
  %1479 = vmatpush.msra.mxu0 %v1459
  %1480 = vmatmul.f32.gmra.mxu0 %v1462
  %v1481 = vpop.f32.mrf.mxu0
  %v1482 = vadd.f32 0.0, %v1481
  %1483 = vdwg.mxu0
  %1484 = vrot.lane.b32.xlu0 %v305, 104
  %v1485 = vpop.permute.xlu0 %1484
  %v1488 = vsel %vm313, %v1427, 0
  %1490 = vmatpush.msra.mxu0 0.0
  %1491 = vmatpush.msra.mxu0 0.0
  %1492 = vmatpush.msra.mxu0 0.0
  %1493 = vmatpush.msra.mxu0 0.0
  %1494 = vmatpush.msra.mxu0 0.0
  %1495 = vmatpush.msra.mxu0 0.0
  %1496 = vmatpush.msra.mxu0 0.0
  %1497 = vmatpush.msra.mxu0 0.0
  %1498 = vmatpush.msra.mxu0 0.0
  %1499 = vmatpush.msra.mxu0 0.0
  %1500 = vmatpush.msra.mxu0 0.0
  %1501 = vmatpush.msra.mxu0 0.0
  %1502 = vmatpush.msra.mxu0 0.0
  %1503 = vmatpush.msra.mxu0 0.0
  %1504 = vmatpush.msra.mxu0 0.0
  %1505 = vmatpush.msra.mxu0 %v1485
  %1506 = vmatmul.f32.gmra.mxu0 %v1488
  %v1507 = vpop.f32.mrf.mxu0
  %v1508 = vadd.f32 0.0, %v1507
  %1509 = vdwg.mxu0
  %1510 = vrot.lane.b32.xlu0 %v308, 104
  %v1511 = vpop.permute.xlu0 %1510
  %v1514 = vsel %vm313, %v1442, 0
  %1516 = vmatpush.msra.mxu0 0.0
  %1517 = vmatpush.msra.mxu0 0.0
  %1518 = vmatpush.msra.mxu0 0.0
  %1519 = vmatpush.msra.mxu0 0.0
  %1520 = vmatpush.msra.mxu0 0.0
  %1521 = vmatpush.msra.mxu0 0.0
  %1522 = vmatpush.msra.mxu0 0.0
  %1523 = vmatpush.msra.mxu0 0.0
  %1524 = vmatpush.msra.mxu0 0.0
  %1525 = vmatpush.msra.mxu0 0.0
  %1526 = vmatpush.msra.mxu0 0.0
  %1527 = vmatpush.msra.mxu0 0.0
  %1528 = vmatpush.msra.mxu0 0.0
  %1529 = vmatpush.msra.mxu0 0.0
  %1530 = vmatpush.msra.mxu0 0.0
  %1531 = vmatpush.msra.mxu0 %v1511
  %1532 = vmatmul.f32.gmra.mxu0 %v1514
  %v1533 = vpop.f32.mrf.mxu0
  %v1534 = vadd.f32 0.0, %v1533
  %1535 = vdwg.mxu0
  %1536 = vrot.lane.b32.xlu0 %v311, 104
  %v1537 = vpop.permute.xlu0 %1536
  %v1540 = vsel %vm313, %v1457, 0
  %1542 = vmatpush.msra.mxu0 0.0
  %1543 = vmatpush.msra.mxu0 0.0
  %1544 = vmatpush.msra.mxu0 0.0
  %1545 = vmatpush.msra.mxu0 0.0
  %1546 = vmatpush.msra.mxu0 0.0
  %1547 = vmatpush.msra.mxu0 0.0
  %1548 = vmatpush.msra.mxu0 0.0
  %1549 = vmatpush.msra.mxu0 0.0
  %1550 = vmatpush.msra.mxu0 0.0
  %1551 = vmatpush.msra.mxu0 0.0
  %1552 = vmatpush.msra.mxu0 0.0
  %1553 = vmatpush.msra.mxu0 0.0
  %1554 = vmatpush.msra.mxu0 0.0
  %1555 = vmatpush.msra.mxu0 0.0
  %1556 = vmatpush.msra.mxu0 0.0
  %1557 = vmatpush.msra.mxu0 %v1537
  %1558 = vmatmul.f32.gmra.mxu0 %v1540
  %v1559 = vpop.f32.mrf.mxu0
  %v1560 = vadd.f32 0.0, %v1559
  %1561 = vdwg.mxu0
  %1566 = vrot.lane.b32.xlu0 %v847, 8
  %v1567 = vpop.permute.xlu0 %1566
  %1568 = vrot.lane.b32.xlu0 %v874, 8
  %v1569 = vpop.permute.xlu0 %1568
  %1570 = vrot.lane.b32.xlu0 %v901, 8
  %v1571 = vpop.permute.xlu0 %1570
  %1572 = vrot.lane.b32.xlu0 %v928, 8
  %v1573 = vpop.permute.xlu0 %1572
  %1582 = vrot.lane.b32.xlu0 %v1166, 16
  %v1583 = vpop.permute.xlu0 %1582
  %1584 = vrot.lane.b32.xlu0 %v1192, 16
  %v1585 = vpop.permute.xlu0 %1584
  %1586 = vrot.lane.b32.xlu0 %v1218, 16
  %v1587 = vpop.permute.xlu0 %1586
  %1588 = vrot.lane.b32.xlu0 %v1244, 16
  %v1589 = vpop.permute.xlu0 %1588
  %1598 = vrot.lane.b32.xlu0 %v1482, 24
  %v1599 = vpop.permute.xlu0 %1598
  %1600 = vrot.lane.b32.xlu0 %v1508, 24
  %v1601 = vpop.permute.xlu0 %1600
  %1602 = vrot.lane.b32.xlu0 %v1534, 24
  %v1603 = vpop.permute.xlu0 %1602
  %1604 = vrot.lane.b32.xlu0 %v1560, 24
  %v1605 = vpop.permute.xlu0 %1604
  %v1610 = vsel %vm313, %v539, %v1567
  %v1611 = vsel %vm313, %v562, %v1569
  %v1612 = vsel %vm313, %v585, %v1571
  %v1613 = vsel %vm313, %v608, %v1573
  %vm1614 = vcmask 130048
  %v1615 = vsel %vm1614, %v1610, %v1583
  %v1616 = vsel %vm1614, %v1611, %v1585
  %v1617 = vsel %vm1614, %v1612, %v1587
  %v1618 = vsel %vm1614, %v1613, %v1589
  %vm1619 = vcmask 195584
  %v1620 = vsel %vm1619, %v1615, %v1599
  %v1621 = vsel %vm1619, %v1616, %v1601
  %v1622 = vsel %vm1619, %v1617, %v1603
  %v1623 = vsel %vm1619, %v1618, %v1605
  %v1624 = vld [vmem:[%s9] sm:$0xff]
  %v1625 = vld [vmem:[%s9 + $0x8] sm:$0xff]
  %v1626 = vld [vmem:[%s9 + $0x10] sm:$0xff]
  %v1627 = vld [vmem:[%s9 + $0x18] sm:$0xff]
  %v1628 = vld [vmem:[%s10] sm:$0x1]
  %v1630 = vperm.slane %v1628, 0
  %v1633 = vsel %vm80, %v1620, 0
  %v1636 = vsel %vm80, %v1621, 0
  %v1639 = vsel %vm80, %v1622, 0
  %v1642 = vsel %vm80, %v1623, 0
  %1644 = vmatpush.msra.mxu0 0.0
  %1645 = vmatpush.msra.mxu0 0.0
  %1646 = vmatpush.msra.mxu0 0.0
  %1647 = vmatpush.msra.mxu0 0.0
  %1648 = vmatpush.msra.mxu0 0.0
  %1649 = vmatpush.msra.mxu0 0.0
  %1650 = vmatpush.msra.mxu0 0.0
  %1651 = vmatpush.msra.mxu0 0.0
  %1652 = vmatpush.msra.mxu0 0.0
  %1653 = vmatpush.msra.mxu0 0.0
  %1654 = vmatpush.msra.mxu0 0.0
  %1655 = vmatpush.msra.mxu0 0.0
  %1656 = vmatpush.msra.mxu0 %v1627
  %1657 = vmatpush.msra.mxu0 %v1626
  %1658 = vmatpush.msra.mxu0 %v1625
  %1659 = vmatpush.msra.mxu0 %v1624
  %1660 = vmatmul.f32.gmra.mxu0 %v1633
  %v1661 = vpop.f32.mrf.mxu0
  %v1662 = vadd.f32 %v1630, %v1661
  %1663 = vmatmul.f32.gmra.mxu0 %v1636
  %v1664 = vpop.f32.mrf.mxu0
  %v1665 = vadd.f32 %v1630, %v1664
  %1666 = vmatmul.f32.gmra.mxu0 %v1639
  %v1667 = vpop.f32.mrf.mxu0
  %v1668 = vadd.f32 %v1630, %v1667
  %1669 = vmatmul.f32.gmra.mxu0 %v1642
  %v1670 = vpop.f32.mrf.mxu0
  %v1671 = vadd.f32 %v1630, %v1670
  %1672 = vdwg.mxu0
  %v1673 = vadd.f32 %v186, %v1662
  %v1674 = vadd.f32 %v187, %v1665
  %v1675 = vadd.f32 %v188, %v1668
  %v1676 = vadd.f32 %v189, %v1671
  %v1677 = vld [vmem:[%s11] sm:$0x1]
  %v1678 = vld [vmem:[%s12] sm:$0x1]
  %v1679 = vsel %vm80, %v1673, 0.0
  %1680 = vadd.xlane.f32.xlu0 %v1679
  %v1681 = vpop.xlane.xlu0 %1680
  %v1682 = vsel %vm80, %v1674, 0.0
  %1683 = vadd.xlane.f32.xlu0 %v1682
  %v1684 = vpop.xlane.xlu0 %1683
  %v1685 = vsel %vm80, %v1675, 0.0
  %1686 = vadd.xlane.f32.xlu0 %v1685
  %v1687 = vpop.xlane.xlu0 %1686
  %v1688 = vsel %vm80, %v1676, 0.0
  %1689 = vadd.xlane.f32.xlu0 %v1688
  %v1690 = vpop.xlane.xlu0 %1689
  %v1691 = vmul.f32 %v1681, %v99
  %v1692 = vmul.f32 %v1684, %v99
  %v1693 = vmul.f32 %v1687, %v99
  %v1694 = vmul.f32 %v1690, %v99
  %v1695 = vsub.f32 %v1673, %v1691
  %v1696 = vsub.f32 %v1674, %v1692
  %v1697 = vsub.f32 %v1675, %v1693
  %v1698 = vsub.f32 %v1676, %v1694
  %v1699 = vmul.f32 %v1695, %v1695
  %v1700 = vmul.f32 %v1696, %v1696
  %v1701 = vmul.f32 %v1697, %v1697
  %v1702 = vmul.f32 %v1698, %v1698
  %v1703 = vsel %vm80, %v1699, 0.0
  %1704 = vadd.xlane.f32.xlu0 %v1703
  %v1705 = vpop.xlane.xlu0 %1704
  %v1706 = vsel %vm80, %v1700, 0.0
  %1707 = vadd.xlane.f32.xlu0 %v1706
  %v1708 = vpop.xlane.xlu0 %1707
  %v1709 = vsel %vm80, %v1701, 0.0
  %1710 = vadd.xlane.f32.xlu0 %v1709
  %v1711 = vpop.xlane.xlu0 %1710
  %v1712 = vsel %vm80, %v1702, 0.0
  %1713 = vadd.xlane.f32.xlu0 %v1712
  %v1714 = vpop.xlane.xlu0 %1713
  %v1715 = vmul.f32 %v1705, %v99
  %v1716 = vmul.f32 %v1708, %v99
  %v1717 = vmul.f32 %v1711, %v99
  %v1718 = vmul.f32 %v1714, %v99
  %v1719 = vadd.f32 %v1715, 1e-12
  %v1720 = vadd.f32 %v1716, 1e-12
  %v1721 = vadd.f32 %v1717, 1e-12
  %v1722 = vadd.f32 %v1718, 1e-12
  %v1723 = vrsqrt.pop %v1719
  %v1724 = vmul.f32 %v1723, %v1719
  %v1725 = vmul.f32 %v1724, %v1723
  %v1726 = vmul.f32 0.5, %v1725
  %v1727 = vsub.f32 1.5, %v1726
  %v1728 = vmul.f32 %v1723, %v1727
  %vm1729 = vweird.f32 %v1719
  %vm1730 = vweird.f32 %v1723
  %vm1731 = vmor %vm1729, %vm1730
  %v1732 = vsel %vm1731, %v1723, %v1728
  %v1733 = vrsqrt.pop %v1720
  %v1734 = vmul.f32 %v1733, %v1720
  %v1735 = vmul.f32 %v1734, %v1733
  %v1736 = vmul.f32 0.5, %v1735
  %v1737 = vsub.f32 1.5, %v1736
  %v1738 = vmul.f32 %v1733, %v1737
  %vm1739 = vweird.f32 %v1720
  %vm1740 = vweird.f32 %v1733
  %vm1741 = vmor %vm1739, %vm1740
  %v1742 = vsel %vm1741, %v1733, %v1738
  %v1743 = vrsqrt.pop %v1721
  %v1744 = vmul.f32 %v1743, %v1721
  %v1745 = vmul.f32 %v1744, %v1743
  %v1746 = vmul.f32 0.5, %v1745
  %v1747 = vsub.f32 1.5, %v1746
  %v1748 = vmul.f32 %v1743, %v1747
  %vm1749 = vweird.f32 %v1721
  %vm1750 = vweird.f32 %v1743
  %vm1751 = vmor %vm1749, %vm1750
  %v1752 = vsel %vm1751, %v1743, %v1748
  %v1753 = vrsqrt.pop %v1722
  %v1754 = vmul.f32 %v1753, %v1722
  %v1755 = vmul.f32 %v1754, %v1753
  %v1756 = vmul.f32 0.5, %v1755
  %v1757 = vsub.f32 1.5, %v1756
  %v1758 = vmul.f32 %v1753, %v1757
  %vm1759 = vweird.f32 %v1722
  %vm1760 = vweird.f32 %v1753
  %vm1761 = vmor %vm1759, %vm1760
  %v1762 = vsel %vm1761, %v1753, %v1758
  %v1763 = vmul.f32 %v1695, %v1732
  %v1764 = vmul.f32 %v1696, %v1742
  %v1765 = vmul.f32 %v1697, %v1752
  %v1766 = vmul.f32 %v1698, %v1762
  %v1768 = vperm.slane %v1677, 0
  %v1770 = vmul.f32 %v1763, %v1768
  %v1771 = vmul.f32 %v1764, %v1768
  %v1772 = vmul.f32 %v1765, %v1768
  %v1773 = vmul.f32 %v1766, %v1768
  %v1775 = vperm.slane %v1678, 0
  %v1777 = vadd.f32 %v1770, %v1775
  %v1778 = vadd.f32 %v1771, %v1775
  %v1779 = vadd.f32 %v1772, %v1775
  %v1780 = vadd.f32 %v1773, %v1775
  %v1781 = vld [vmem:[%s13] sm:$0xff]
  %v1782 = vld [vmem:[%s13 + $0x8] sm:$0xff]
  %v1783 = vld [vmem:[%s13 + $0x10] sm:$0xff]
  %v1784 = vld [vmem:[%s13 + $0x18] sm:$0xff]
  %v1785 = vld [vmem:[%s14] sm:$0x1]
  %v1787 = vperm.slane %v1785, 0
  %v1790 = vsel %vm80, %v1777, 0
  %v1793 = vsel %vm80, %v1778, 0
  %v1796 = vsel %vm80, %v1779, 0
  %v1799 = vsel %vm80, %v1780, 0
  %1801 = vmatpush.msra.mxu0 0.0
  %1802 = vmatpush.msra.mxu0 0.0
  %1803 = vmatpush.msra.mxu0 0.0
  %1804 = vmatpush.msra.mxu0 0.0
  %1805 = vmatpush.msra.mxu0 0.0
  %1806 = vmatpush.msra.mxu0 0.0
  %1807 = vmatpush.msra.mxu0 0.0
  %1808 = vmatpush.msra.mxu0 0.0
  %1809 = vmatpush.msra.mxu0 0.0
  %1810 = vmatpush.msra.mxu0 0.0
  %1811 = vmatpush.msra.mxu0 0.0
  %1812 = vmatpush.msra.mxu0 0.0
  %1813 = vmatpush.msra.mxu0 %v1784
  %1814 = vmatpush.msra.mxu0 %v1783
  %1815 = vmatpush.msra.mxu0 %v1782
  %1816 = vmatpush.msra.mxu0 %v1781
  %1817 = vmatmul.f32.gmra.mxu0 %v1790
  %v1818 = vpop.f32.mrf.mxu0
  %v1819 = vadd.f32 %v1787, %v1818
  %1820 = vmatmul.f32.gmra.mxu0 %v1793
  %v1821 = vpop.f32.mrf.mxu0
  %v1822 = vadd.f32 %v1787, %v1821
  %1823 = vmatmul.f32.gmra.mxu0 %v1796
  %v1824 = vpop.f32.mrf.mxu0
  %v1825 = vadd.f32 %v1787, %v1824
  %1826 = vmatmul.f32.gmra.mxu0 %v1799
  %v1827 = vpop.f32.mrf.mxu0
  %v1828 = vadd.f32 %v1787, %v1827
  %1829 = vdwg.mxu0
  %v1830 = vmul.f32 %v1819, %v1819
  %v1831 = vmul.f32 %v1822, %v1822
  %v1832 = vmul.f32 %v1825, %v1825
  %v1833 = vmul.f32 %v1828, %v1828
  %v1834 = vmul.f32 %v1819, %v1830
  %v1835 = vmul.f32 %v1822, %v1831
  %v1836 = vmul.f32 %v1825, %v1832
  %v1837 = vmul.f32 %v1828, %v1833
  %v1838 = vmul.f32 %v1834, 0.044715
  %v1839 = vmul.f32 %v1835, 0.044715
  %v1840 = vmul.f32 %v1836, 0.044715
  %v1841 = vmul.f32 %v1837, 0.044715
  %v1842 = vadd.f32 %v1819, %v1838
  %v1843 = vadd.f32 %v1822, %v1839
  %v1844 = vadd.f32 %v1825, %v1840
  %v1845 = vadd.f32 %v1828, %v1841
  %v1846 = vmul.f32 %v1842, 0.7978846
  %v1847 = vmul.f32 %v1843, 0.7978846
  %v1848 = vmul.f32 %v1844, 0.7978846
  %v1849 = vmul.f32 %v1845, 0.7978846
  %v1850 = vtanh.pop %v1846
  %v1851 = vtanh.pop %v1847
  %v1852 = vtanh.pop %v1848
  %v1853 = vtanh.pop %v1849
  %v1854 = vadd.f32 %v1850, 1.0
  %v1855 = vadd.f32 %v1851, 1.0
  %v1856 = vadd.f32 %v1852, 1.0
  %v1857 = vadd.f32 %v1853, 1.0
  %v1858 = vmul.f32 %v1854, 0.5
  %v1859 = vmul.f32 %v1855, 0.5
  %v1860 = vmul.f32 %v1856, 0.5
  %v1861 = vmul.f32 %v1857, 0.5
  %v1862 = vmul.f32 %v1819, %v1858
  %v1863 = vmul.f32 %v1822, %v1859
  %v1864 = vmul.f32 %v1825, %v1860
  %v1865 = vmul.f32 %v1828, %v1861
  %v1866 = vld [vmem:[%s15] sm:$0xff]
  %v1867 = vld [vmem:[%s15 + $0x8] sm:$0xff]
  %v1868 = vld [vmem:[%s15 + $0x10] sm:$0xff]
  %v1869 = vld [vmem:[%s15 + $0x18] sm:$0xff]
  %v1870 = vld [vmem:[%s15 + $0x20] sm:$0xff]
  %v1871 = vld [vmem:[%s15 + $0x28] sm:$0xff]
  %v1872 = vld [vmem:[%s15 + $0x30] sm:$0xff]
  %v1873 = vld [vmem:[%s15 + $0x38] sm:$0xff]
  %v1874 = vld [vmem:[%s16] sm:$0x1]
  %v1876 = vperm.slane %v1874, 0
  %vm1878 = vcmask 523264
  %v1880 = vsel %vm1878, %v1862, 0
  %v1883 = vsel %vm1878, %v1863, 0
  %v1886 = vsel %vm1878, %v1864, 0
  %v1889 = vsel %vm1878, %v1865, 0
  %1891 = vmatpush.msra.mxu0 0.0
  %1892 = vmatpush.msra.mxu0 0.0
  %1893 = vmatpush.msra.mxu0 0.0
  %1894 = vmatpush.msra.mxu0 0.0
  %1895 = vmatpush.msra.mxu0 0.0
  %1896 = vmatpush.msra.mxu0 0.0
  %1897 = vmatpush.msra.mxu0 0.0
  %1898 = vmatpush.msra.mxu0 0.0
  %1899 = vmatpush.msra.mxu0 %v1873
  %1900 = vmatpush.msra.mxu0 %v1872
  %1901 = vmatpush.msra.mxu0 %v1871
  %1902 = vmatpush.msra.mxu0 %v1870
  %1903 = vmatpush.msra.mxu0 %v1869
  %1904 = vmatpush.msra.mxu0 %v1868
  %1905 = vmatpush.msra.mxu0 %v1867
  %1906 = vmatpush.msra.mxu0 %v1866
  %1907 = vmatmul.f32.gmra.mxu0 %v1880
  %v1908 = vpop.f32.mrf.mxu0
  %v1909 = vadd.f32 %v1876, %v1908
  %1910 = vmatmul.f32.gmra.mxu0 %v1883
  %v1911 = vpop.f32.mrf.mxu0
  %v1912 = vadd.f32 %v1876, %v1911
  %1913 = vmatmul.f32.gmra.mxu0 %v1886
  %v1914 = vpop.f32.mrf.mxu0
  %v1915 = vadd.f32 %v1876, %v1914
  %1916 = vmatmul.f32.gmra.mxu0 %v1889
  %v1917 = vpop.f32.mrf.mxu0
  %v1918 = vadd.f32 %v1876, %v1917
  %1919 = vdwg.mxu0
  %v1920 = vadd.f32 %v1777, %v1909
  %v1921 = vadd.f32 %v1778, %v1912
  %v1922 = vadd.f32 %v1779, %v1915
  %v1923 = vadd.f32 %v1780, %v1918
  %v1924 = vld [vmem:[%s17] sm:$0x1]
  %v1925 = vld [vmem:[%s18] sm:$0x1]
  %v1926 = vsel %vm80, %v1920, 0.0
  %1927 = vadd.xlane.f32.xlu0 %v1926
  %v1928 = vpop.xlane.xlu0 %1927
  %v1929 = vsel %vm80, %v1921, 0.0
  %1930 = vadd.xlane.f32.xlu0 %v1929
  %v1931 = vpop.xlane.xlu0 %1930
  %v1932 = vsel %vm80, %v1922, 0.0
  %1933 = vadd.xlane.f32.xlu0 %v1932
  %v1934 = vpop.xlane.xlu0 %1933
  %v1935 = vsel %vm80, %v1923, 0.0
  %1936 = vadd.xlane.f32.xlu0 %v1935
  %v1937 = vpop.xlane.xlu0 %1936
  %v1938 = vmul.f32 %v1928, %v99
  %v1939 = vmul.f32 %v1931, %v99
  %v1940 = vmul.f32 %v1934, %v99
  %v1941 = vmul.f32 %v1937, %v99
  %v1942 = vsub.f32 %v1920, %v1938
  %v1943 = vsub.f32 %v1921, %v1939
  %v1944 = vsub.f32 %v1922, %v1940
  %v1945 = vsub.f32 %v1923, %v1941
  %v1946 = vmul.f32 %v1942, %v1942
  %v1947 = vmul.f32 %v1943, %v1943
  %v1948 = vmul.f32 %v1944, %v1944
  %v1949 = vmul.f32 %v1945, %v1945
  %v1950 = vsel %vm80, %v1946, 0.0
  %1951 = vadd.xlane.f32.xlu0 %v1950
  %v1952 = vpop.xlane.xlu0 %1951
  %v1953 = vsel %vm80, %v1947, 0.0
  %1954 = vadd.xlane.f32.xlu0 %v1953
  %v1955 = vpop.xlane.xlu0 %1954
  %v1956 = vsel %vm80, %v1948, 0.0
  %1957 = vadd.xlane.f32.xlu0 %v1956
  %v1958 = vpop.xlane.xlu0 %1957
  %v1959 = vsel %vm80, %v1949, 0.0
  %1960 = vadd.xlane.f32.xlu0 %v1959
  %v1961 = vpop.xlane.xlu0 %1960
  %v1962 = vmul.f32 %v1952, %v99
  %v1963 = vmul.f32 %v1955, %v99
  %v1964 = vmul.f32 %v1958, %v99
  %v1965 = vmul.f32 %v1961, %v99
  %v1966 = vadd.f32 %v1962, 1e-12
  %v1967 = vadd.f32 %v1963, 1e-12
  %v1968 = vadd.f32 %v1964, 1e-12
  %v1969 = vadd.f32 %v1965, 1e-12
  %v1970 = vrsqrt.pop %v1966
  %v1971 = vmul.f32 %v1970, %v1966
  %v1972 = vmul.f32 %v1971, %v1970
  %v1973 = vmul.f32 0.5, %v1972
  %v1974 = vsub.f32 1.5, %v1973
  %v1975 = vmul.f32 %v1970, %v1974
  %vm1976 = vweird.f32 %v1966
  %vm1977 = vweird.f32 %v1970
  %vm1978 = vmor %vm1976, %vm1977
  %v1979 = vsel %vm1978, %v1970, %v1975
  %v1980 = vrsqrt.pop %v1967
  %v1981 = vmul.f32 %v1980, %v1967
  %v1982 = vmul.f32 %v1981, %v1980
  %v1983 = vmul.f32 0.5, %v1982
  %v1984 = vsub.f32 1.5, %v1983
  %v1985 = vmul.f32 %v1980, %v1984
  %vm1986 = vweird.f32 %v1967
  %vm1987 = vweird.f32 %v1980
  %vm1988 = vmor %vm1986, %vm1987
  %v1989 = vsel %vm1988, %v1980, %v1985
  %v1990 = vrsqrt.pop %v1968
  %v1991 = vmul.f32 %v1990, %v1968
  %v1992 = vmul.f32 %v1991, %v1990
  %v1993 = vmul.f32 0.5, %v1992
  %v1994 = vsub.f32 1.5, %v1993
  %v1995 = vmul.f32 %v1990, %v1994
  %vm1996 = vweird.f32 %v1968
  %vm1997 = vweird.f32 %v1990
  %vm1998 = vmor %vm1996, %vm1997
  %v1999 = vsel %vm1998, %v1990, %v1995
  %v2000 = vrsqrt.pop %v1969
  %v2001 = vmul.f32 %v2000, %v1969
  %v2002 = vmul.f32 %v2001, %v2000
  %v2003 = vmul.f32 0.5, %v2002
  %v2004 = vsub.f32 1.5, %v2003
  %v2005 = vmul.f32 %v2000, %v2004
  %vm2006 = vweird.f32 %v1969
  %vm2007 = vweird.f32 %v2000
  %vm2008 = vmor %vm2006, %vm2007
  %v2009 = vsel %vm2008, %v2000, %v2005
  %v2010 = vmul.f32 %v1942, %v1979
  %v2011 = vmul.f32 %v1943, %v1989
  %v2012 = vmul.f32 %v1944, %v1999
  %v2013 = vmul.f32 %v1945, %v2009
  %v2015 = vperm.slane %v1924, 0
  %v2017 = vmul.f32 %v2010, %v2015
  %v2018 = vmul.f32 %v2011, %v2015
  %v2019 = vmul.f32 %v2012, %v2015
  %v2020 = vmul.f32 %v2013, %v2015
  %v2022 = vperm.slane %v1925, 0
  %v2024 = vadd.f32 %v2017, %v2022
  %v2025 = vadd.f32 %v2018, %v2022
  %v2026 = vadd.f32 %v2019, %v2022
  %v2027 = vadd.f32 %v2020, %v2022
  %v2028 = vsub.f32 %v2024, %v2025
  %v2029 = vsub.f32 %v2026, %v2027
  %v2030 = vand.u32 2147483647, %v2028
  %v2031 = vand.u32 2147483647, %v2029
  %v2032 = vld [vmem:[%s19] sm:$0xff]
  %v2033 = vld [vmem:[%s19 + $0x8] sm:$0xff]
  %v2034 = vld [vmem:[%s19 + $0x10] sm:$0xff]
  %v2035 = vld [vmem:[%s19 + $0x18] sm:$0xff]
  %v2036 = vld [vmem:[%s20] sm:$0xff]
  %v2037 = vld [vmem:[%s20 + $0x8] sm:$0xff]
  %v2038 = vld [vmem:[%s20 + $0x10] sm:$0xff]
  %v2039 = vld [vmem:[%s20 + $0x18] sm:$0xff]
  %v2042 = vrot.slane %v2027, 7
  %vm2043 = vcmask 1041409
  %v2044 = vsel %vm2043, %v2042, %v2025
  %v2045 = vsel %vm80, %v2044, 0
  %2047 = vmatpush.msra.mxu0 0.0
  %2048 = vmatpush.msra.mxu0 0.0
  %2049 = vmatpush.msra.mxu0 0.0
  %2050 = vmatpush.msra.mxu0 0.0
  %2051 = vmatpush.msra.mxu0 0.0
  %2052 = vmatpush.msra.mxu0 0.0
  %2053 = vmatpush.msra.mxu0 0.0
  %2054 = vmatpush.msra.mxu0 0.0
  %2055 = vmatpush.msra.mxu0 0.0
  %2056 = vmatpush.msra.mxu0 0.0
  %2057 = vmatpush.msra.mxu0 0.0
  %2058 = vmatpush.msra.mxu0 0.0
  %2059 = vmatpush.msra.mxu0 %v2039
  %2060 = vmatpush.msra.mxu0 %v2038
  %2061 = vmatpush.msra.mxu0 %v2037
  %2062 = vmatpush.msra.mxu0 %v2036
  %2063 = vmatmul.f32.gmra.mxu0 %v2045
  %v2064 = vpop.f32.mrf.mxu0
  %v2065 = vadd.f32 0.0, %v2064
  %2066 = vdwg.mxu0
  %v2069 = vrot.slane %v2026, 7
  %v2070 = vsel %vm2043, %v2069, %v2024
  %v2071 = vsel %vm80, %v2070, 0
  %2073 = vmatpush.msra.mxu0 0.0
  %2074 = vmatpush.msra.mxu0 0.0
  %2075 = vmatpush.msra.mxu0 0.0
  %2076 = vmatpush.msra.mxu0 0.0
  %2077 = vmatpush.msra.mxu0 0.0
  %2078 = vmatpush.msra.mxu0 0.0
  %2079 = vmatpush.msra.mxu0 0.0
  %2080 = vmatpush.msra.mxu0 0.0
  %2081 = vmatpush.msra.mxu0 0.0
  %2082 = vmatpush.msra.mxu0 0.0
  %2083 = vmatpush.msra.mxu0 0.0
  %2084 = vmatpush.msra.mxu0 0.0
  %2085 = vmatpush.msra.mxu0 %v2035
  %2086 = vmatpush.msra.mxu0 %v2034
  %2087 = vmatpush.msra.mxu0 %v2033
  %2088 = vmatpush.msra.mxu0 %v2032
  %2089 = vmatmul.f32.gmra.mxu0 %v2071
  %v2090 = vpop.f32.mrf.mxu0
  %v2091 = vadd.f32 %v2065, %v2090
  %2092 = vdwg.mxu0
  %v2093 = vld [vmem:[%s21] sm:$0xff]
  %v2094 = vld [vmem:[%s21 + $0x8] sm:$0xff]
  %v2095 = vld [vmem:[%s21 + $0x10] sm:$0xff]
  %v2096 = vld [vmem:[%s21 + $0x18] sm:$0xff]
  %v2099 = vrot.slane %v2031, 7
  %v2100 = vsel %vm2043, %v2099, %v2030
  %v2101 = vsel %vm80, %v2100, 0
  %2103 = vmatpush.msra.mxu0 0.0
  %2104 = vmatpush.msra.mxu0 0.0
  %2105 = vmatpush.msra.mxu0 0.0
  %2106 = vmatpush.msra.mxu0 0.0
  %2107 = vmatpush.msra.mxu0 0.0
  %2108 = vmatpush.msra.mxu0 0.0
  %2109 = vmatpush.msra.mxu0 0.0
  %2110 = vmatpush.msra.mxu0 0.0
  %2111 = vmatpush.msra.mxu0 0.0
  %2112 = vmatpush.msra.mxu0 0.0
  %2113 = vmatpush.msra.mxu0 0.0
  %2114 = vmatpush.msra.mxu0 0.0
  %2115 = vmatpush.msra.mxu0 %v2096
  %2116 = vmatpush.msra.mxu0 %v2095
  %2117 = vmatpush.msra.mxu0 %v2094
  %2118 = vmatpush.msra.mxu0 %v2093
  %2119 = vmatmul.f32.gmra.mxu0 %v2101
  %v2120 = vpop.f32.mrf.mxu0
  %v2121 = vadd.f32 0.0, %v2120
  %2122 = vdwg.mxu0
  %v2123 = vadd.f32 %v2091, %v2121
  %v2124 = vld [vmem:[%s22] sm:$0x1]
  %v2126 = vperm.slane %v2124, 0
  %v2128 = vadd.f32 %v2123, %v2126
  %v2129 = vmul.f32 %v2024, %v2025
  %v2130 = vmul.f32 %v2026, %v2027
  %v2133 = vrot.slane %v2130, 7
  %v2134 = vsel %vm2043, %v2133, %v2129
  %vm2136 = vcmask 254976
  %v2137 = vsel %vm2136, %v2134, 0.0
  %2138 = vadd.xlane.f32.xlu0 %v2137
  %v2139 = vpop.xlane.xlu0 %2138
  %v2140 = vmul.f32 %v2024, %v2024
  %v2141 = vmul.f32 %v2026, %v2026
  %v2144 = vrot.slane %v2141, 7
  %v2145 = vsel %vm2043, %v2144, %v2140
  %v2147 = vsel %vm2136, %v2145, 0.0
  %2148 = vadd.xlane.f32.xlu0 %v2147
  %v2149 = vpop.xlane.xlu0 %2148
  %v2150 = vadd.f32 %v2149, 1e-12
  %v2151 = vrsqrt.pop %v2150
  %v2152 = vmul.f32 %v2151, %v2150
  %v2153 = vmul.f32 %v2152, %v2151
  %v2154 = vmul.f32 0.5, %v2153
  %v2155 = vsub.f32 1.5, %v2154
  %v2156 = vmul.f32 %v2151, %v2155
  %vm2157 = vweird.f32 %v2150
  %vm2158 = vweird.f32 %v2151
  %vm2159 = vmor %vm2157, %vm2158
  %v2160 = vsel %vm2159, %v2151, %v2156
  %v2161 = vmul.f32 %v2025, %v2025
  %v2162 = vmul.f32 %v2027, %v2027
  %v2165 = vrot.slane %v2162, 7
  %v2166 = vsel %vm2043, %v2165, %v2161
  %v2168 = vsel %vm2136, %v2166, 0.0
  %2169 = vadd.xlane.f32.xlu0 %v2168
  %v2170 = vpop.xlane.xlu0 %2169
  %v2171 = vadd.f32 %v2170, 1e-12
  %v2172 = vrsqrt.pop %v2171
  %v2173 = vmul.f32 %v2172, %v2171
  %v2174 = vmul.f32 %v2173, %v2172
  %v2175 = vmul.f32 0.5, %v2174
  %v2176 = vsub.f32 1.5, %v2175
  %v2177 = vmul.f32 %v2172, %v2176
  %vm2178 = vweird.f32 %v2171
  %vm2179 = vweird.f32 %v2172
  %vm2180 = vmor %vm2178, %vm2179
  %v2181 = vsel %vm2180, %v2172, %v2177
  %v2182 = vmul.f32 %v2139, %v2160
  %v2183 = vmul.f32 %v2182, %v2181
  %v2184 = vlaneseq
  %v2185 = vand.u32 %v2184, 127
  %vm2186 = vcmp.eq.s32.totalorder %v2185, 0
  %vm2187 = vcmp.eq.s32.totalorder %v2185, 1
  %vm2188 = vcmp.eq.s32.totalorder %v2185, 2
  %v2189 = vsel %vm2188, %v2183, 0.0
  %2191 = vset.pattern.permute.xlu0 1
  %2192 = vperm.xlu0 %2191, %v2128
  %v2193 = vpop.permute.xlu0 %2192
  %v2195 = vsel %vm2187, %v2193, %v2189
  %2196 = vset.pattern.permute.xlu0 0
  %2197 = vperm.xlu0 %2196, %v2128
  %v2198 = vpop.permute.xlu0 %2197
  %v2200 = vsel %vm2186, %v2198, %v2195
  %2201 = vst [vmem:[%s23] sm:$0x3] %v2200
  // Predicated region
  $region94: #{sentence_bert_forward.1} parent=0 // pred_check
    _
  $region95: #{sentence_bert_forward.1} parent=0 // pred_check_branch
    %2203 = sbr.rel (0) target = $region97
  $region96: #{sentence_bert_forward.1} parent=0 // pred_region
    _
  $region97: #{sentence_bert_forward.1} parent=0 // pred_fallthru
    _
  // Predicated region
  $region98: #{sentence_bert_forward.1} parent=0 // pred_check
    _
  $region99: #{sentence_bert_forward.1} parent=0 // pred_check_branch
    %2205 = sbr.rel (0) target = $region101
  $region100: #{sentence_bert_forward.1} parent=0 // pred_region
    _
  $region101: #{sentence_bert_forward.1} parent=0 // pred_fallthru
    _

</llo_original>
